<compile_context>
chip_gen: v5e
topology: v5e:2x2
jax: 0.10.0
libtpu: 0.0.40
codegen_flags: <defaults>
</compile_context>

<pallas_src>
import functools

import jax
import jax.numpy as jnp
from jax.experimental import pallas as pl
from jax.experimental.pallas import tpu as pltpu


# ---------------------------------------------------------------------------
# Pallas kernel: full XYA forward for one batch element (channel-first).
# ---------------------------------------------------------------------------
def xya_kernel(x_ref,
               w0_ref, b0_ref,
               w1_ref, b1_ref, bns_ref, bnb_ref,
               w2_ref, b2_ref,
               w3_ref, b3_ref,
               w4_ref, b4_ref,
               o_ref,
               *, h, w):
    x = x_ref[0]                                   # (Cin, H*W)  lane dim = H*W
    cin, hw = x.shape

    # identity = sigmoid(conv0(x)):  (oup, Cin) @ (Cin, H*W) -> (oup, H*W)
    ident = jax.nn.sigmoid(
        jnp.dot(w0_ref[...], x, preferred_element_type=jnp.float32)
        + b0_ref[...])

    # pool_h: mean over W -> (Cin, H);  pool_w: mean over H -> (Cin, W)
    x3 = x.reshape(cin, h, w)
    x_h = jnp.mean(x3, axis=2)                     # (Cin, H)
    x_w = jnp.mean(x3, axis=1)                     # (Cin, W)

    # conv1 + BN + h_swish applied separately to the two pooled tensors
    # (identical to concat -> conv1 -> split for a 1x1 conv, without the
    #  concat/split relayouts).
    def conv1_bn_hswish(v):
        y = jnp.dot(w1_ref[...], v, preferred_element_type=jnp.float32) + b1_ref[...]
        y = y * bns_ref[...] + bnb_ref[...]        # BatchNorm (eval affine form)
        return y * (jnp.clip(y + 3.0, 0.0, 6.0) * (1.0 / 6.0))   # h_swish

    yh = conv1_bn_hswish(x_h)                      # (mip, H)
    yw = conv1_bn_hswish(x_w)                      # (mip, W)

    # conv2 / conv3 + sigmoid
    ah = jax.nn.sigmoid(
        jnp.dot(w2_ref[...], yh, preferred_element_type=jnp.float32) + b2_ref[...])  # (oup, H)
    aw = jax.nn.sigmoid(
        jnp.dot(w3_ref[...], yw, preferred_element_type=jnp.float32) + b3_ref[...])  # (oup, W)

    # gate[o, h*W + w] = ah[o, h] * aw[o, w]  (broadcast across the missing axis)
    oup = ah.shape[0]
    gate = (ah[:, :, None] * aw[:, None, :]).reshape(oup, hw)    # (oup, H*W)
    y2 = ident * gate                                            # (oup, H*W)

    # conv4 + sigmoid, stored directly in lane-dense (oup, H*W) layout
    out = jax.nn.sigmoid(
        jnp.dot(w4_ref[...], y2, preferred_element_type=jnp.float32) + b4_ref[...])
    o_ref[0] = out


# ---------------------------------------------------------------------------
# Wrapper
# ---------------------------------------------------------------------------
def xya_forward(x_nchw, params):
    """x_nchw: (N, Cin, H, W) float32. Returns (N, oup, H, W)."""
    (w0, b0, w1, b1, bns, bnb, w2, b2, w3, b3, w4, b4) = params
    n, cin, h, w = x_nchw.shape
    oup = w0.shape[0]
    hw = h * w

    # Contiguous (free) reshape; no HBM transpose.
    x_flat = x_nchw.reshape(n, cin, hw)

    full = lambda arr: pl.BlockSpec(arr.shape, lambda b, _r=arr.ndim: (0,) * _r)

    kernel = functools.partial(xya_kernel, h=h, w=w)

    out_flat = pl.pallas_call(
        kernel,
        out_shape=jax.ShapeDtypeStruct((n, oup, hw), jnp.float32),
        grid_spec=pltpu.PrefetchScalarGridSpec(
            num_scalar_prefetch=0,
            grid=(n,),
            in_specs=[
                pl.BlockSpec((1, cin, hw), lambda b: (b, 0, 0)),
                full(w0), full(b0),
                full(w1), full(b1), full(bns), full(bnb),
                full(w2), full(b2),
                full(w3), full(b3),
                full(w4), full(b4),
            ],
            out_specs=pl.BlockSpec((1, oup, hw), lambda b: (b, 0, 0)),
        ),
        compiler_params=pltpu.CompilerParams(
            dimension_semantics=("parallel",)),
    )(x_flat, w0, b0, w1, b1, bns, bnb, w2, b2, w3, b3, w4, b4)

    # Contiguous (free) reshape back to NCHW.
    return out_flat.reshape(n, oup, h, w)


# ---------------------------------------------------------------------------
# Pure-JAX reference (NCHW, mirrors the PyTorch module exactly)
# ---------------------------------------------------------------------------
def xya_reference(x, params):
    (w0, b0, w1, b1, bns, bnb, w2, b2, w3, b3, w4, b4) = params
    n, c, h, w = x.shape

    def conv1x1(v, wt, bt):
        # v: (n, cin, H, W), wt: (cout, cin), bt: (cout, 1)
        return jnp.einsum('oc,nchw->nohw', wt, v) + bt.reshape(1, -1, 1, 1)

    ident = jax.nn.sigmoid(conv1x1(x, w0, b0))
    x_h = x.mean(axis=3, keepdims=True)                        # (n,c,h,1)
    x_w = x.mean(axis=2, keepdims=True).transpose(0, 1, 3, 2)  # (n,c,w,1)
    y = jnp.concatenate([x_h, x_w], axis=2)                    # (n,c,h+w,1)
    y = conv1x1(y, w1, b1)
    y = y * bns.reshape(1, -1, 1, 1) + bnb.reshape(1, -1, 1, 1)
    y = y * (jnp.clip(y + 3.0, 0.0, 6.0) / 6.0)                # h_swish
    xh, xw = y[:, :, :h], y[:, :, h:]
    xw = xw.transpose(0, 1, 3, 2)                              # (n,mip,1,w)
    xh = jax.nn.sigmoid(conv1x1(xh, w2, b2))                   # (n,oup,h,1)
    xw = jax.nn.sigmoid(conv1x1(xw, w3, b3))                   # (n,oup,1,w)
    y = ident * xw * xh
    return jax.nn.sigmoid(conv1x1(y, w4, b4))


# ---------------------------------------------------------------------------
# Deterministic parameter init (synthetic; shapes follow XYA.__init__),
# stored channel-first: weights (Cout, Cin), biases (Cout, 1).
# ---------------------------------------------------------------------------
def make_params(key, inp, oup, groups=32):
    mip = max(inp, inp // groups)
    ks = jax.random.split(key, 12)

    def mat(k, o, i):
        return jax.random.normal(k, (o, i), jnp.float32) * 0.1

    def vec(k, o):
        return jax.random.normal(k, (o, 1), jnp.float32) * 0.05

    w0, b0 = mat(ks[0], oup, inp), vec(ks[1], oup)
    w1, b1 = mat(ks[2], mip, inp), vec(ks[3], mip)
    # BatchNorm2d (eval form): precomputed scale/shift.
    gamma = 1.0 + 0.1 * jax.random.normal(ks[4], (mip, 1), jnp.float32)
    beta = 0.05 * jax.random.normal(ks[5], (mip, 1), jnp.float32)
    running_mean = 0.1 * jax.random.normal(ks[6], (mip, 1), jnp.float32)
    running_var = jnp.abs(1.0 + 0.1 * jax.random.normal(ks[7], (mip, 1), jnp.float32))
    eps = 1e-5
    bns = gamma / jnp.sqrt(running_var + eps)
    bnb = beta - running_mean * bns
    w2, b2 = mat(ks[8], oup, mip), vec(ks[9], oup)
    w3, b3 = mat(ks[10], oup, mip), vec(ks[11], oup)
    w4 = mat(jax.random.fold_in(key, 100), oup, oup)
    b4 = vec(jax.random.fold_in(key, 101), oup)
    return (w0, b0, w1, b1, bns, bnb, w2, b2, w3, b3, w4, b4)


if __name__ == "__main__":
    key = jax.random.PRNGKey(0)
    n, inp, oup, h, w = 2, 4, 8, 16, 16   # mip = max(4, 4//32) = 4

    kx, kp = jax.random.split(key)
    x = jax.random.normal(kx, (n, inp, h, w), jnp.float32)
    params = make_params(kp, inp, oup)

    out = xya_forward(x, params)
    out = jax.block_until_ready(out)

    ref = xya_reference(x, params)
    assert out.shape == (n, oup, h, w), out.shape
    assert jnp.allclose(out, ref, atol=1e-5, rtol=1e-5), \
        float(jnp.max(jnp.abs(out - ref)))

    print("KERNEL_OK")
</pallas_src>

<mosaic_0001>
module attributes {stable_mosaic.version = 11 : i64} {
  func.func @xya_kernel(%arg0: i32, %arg1: memref<1x4x256xf32, #tpu.memory_space<vmem>>, %arg2: memref<8x4xf32, #tpu.memory_space<vmem>>, %arg3: memref<8x1xf32, #tpu.memory_space<vmem>>, %arg4: memref<4x4xf32, #tpu.memory_space<vmem>>, %arg5: memref<4x1xf32, #tpu.memory_space<vmem>>, %arg6: memref<4x1xf32, #tpu.memory_space<vmem>>, %arg7: memref<4x1xf32, #tpu.memory_space<vmem>>, %arg8: memref<8x4xf32, #tpu.memory_space<vmem>>, %arg9: memref<8x1xf32, #tpu.memory_space<vmem>>, %arg10: memref<8x4xf32, #tpu.memory_space<vmem>>, %arg11: memref<8x1xf32, #tpu.memory_space<vmem>>, %arg12: memref<8x8xf32, #tpu.memory_space<vmem>>, %arg13: memref<8x1xf32, #tpu.memory_space<vmem>>, %arg14: memref<1x8x256xf32, #tpu.memory_space<vmem>>) attributes {dimension_semantics = [#tpu.dimension_semantics<parallel>], iteration_bounds = array<i64: 2>, scalar_prefetch = 0 : i64, scratch_operands = 0 : i64, tpu.core_type = #tpu.core_type<tc>, window_params = [{transform_indices = @transform_0, window_bounds = array<i64: 1, 4, 256>}, {pipeline_mode = #tpu.pipeline_mode<synchronous>, transform_indices = @transform_1, window_bounds = array<i64: 8, 4>}, {pipeline_mode = #tpu.pipeline_mode<synchronous>, transform_indices = @transform_2, window_bounds = array<i64: 8, 1>}, {pipeline_mode = #tpu.pipeline_mode<synchronous>, transform_indices = @transform_3, window_bounds = array<i64: 4, 4>}, {pipeline_mode = #tpu.pipeline_mode<synchronous>, transform_indices = @transform_4, window_bounds = array<i64: 4, 1>}, {pipeline_mode = #tpu.pipeline_mode<synchronous>, transform_indices = @transform_5, window_bounds = array<i64: 4, 1>}, {pipeline_mode = #tpu.pipeline_mode<synchronous>, transform_indices = @transform_6, window_bounds = array<i64: 4, 1>}, {pipeline_mode = #tpu.pipeline_mode<synchronous>, transform_indices = @transform_7, window_bounds = array<i64: 8, 4>}, {pipeline_mode = #tpu.pipeline_mode<synchronous>, transform_indices = @transform_8, window_bounds = array<i64: 8, 1>}, {pipeline_mode = #tpu.pipeline_mode<synchronous>, transform_indices = @transform_9, window_bounds = array<i64: 8, 4>}, {pipeline_mode = #tpu.pipeline_mode<synchronous>, transform_indices = @transform_10, window_bounds = array<i64: 8, 1>}, {pipeline_mode = #tpu.pipeline_mode<synchronous>, transform_indices = @transform_11, window_bounds = array<i64: 8, 8>}, {pipeline_mode = #tpu.pipeline_mode<synchronous>, transform_indices = @transform_12, window_bounds = array<i64: 8, 1>}, {transform_indices = @transform_13, window_bounds = array<i64: 1, 8, 256>}]} {
    %c0 = arith.constant 0 : index
    %c0_0 = arith.constant 0 : index
    %c0_1 = arith.constant 0 : index
    %0 = vector.load %arg1[%c0, %c0_0, %c0_1] : memref<1x4x256xf32, #tpu.memory_space<vmem>>, vector<1x4x256xf32>
    %1 = vector.shape_cast %0 : vector<1x4x256xf32> to vector<4x256xf32>
    %c0_2 = arith.constant 0 : index
    %c0_3 = arith.constant 0 : index
    %2 = vector.load %arg2[%c0_2, %c0_3] : memref<8x4xf32, #tpu.memory_space<vmem>>, vector<8x4xf32>
    %cst = arith.constant dense<0.000000e+00> : vector<8x256xf32>
    %3 = tpu.matmul %2, %1, %cst {dimension_numbers = #tpu.dot_dimension_numbers<[1], [0], [0], [1], [0, 0, 1, 1], [], []>} : vector<8x4xf32>, vector<4x256xf32>, vector<8x256xf32> -> vector<8x256xf32>
    %c0_4 = arith.constant 0 : index
    %c0_5 = arith.constant 0 : index
    %4 = vector.load %arg3[%c0_4, %c0_5] : memref<8x1xf32, #tpu.memory_space<vmem>>, vector<8x1xf32>
    %5 = vector.broadcast %4 : vector<8x1xf32> to vector<8x256xf32>
    %6 = arith.addf %3, %5 : vector<8x256xf32>
    %7 = arith.negf %6 : vector<8x256xf32>
    %8 = math.exp %7 : vector<8x256xf32>
    %cst_6 = arith.constant 1.000000e+00 : f32
    %9 = vector.broadcast %cst_6 : f32 to vector<8x256xf32>
    %10 = arith.addf %9, %8 : vector<8x256xf32>
    %11 = arith.divf %9, %10 : vector<8x256xf32>
    %12 = vector.shape_cast %1 : vector<4x256xf32> to vector<4x16x16xf32>
    %cst_7 = arith.constant dense<0.000000e+00> : vector<4x16xf32>
    %13 = vector.multi_reduction <add>, %12, %cst_7 [2] : vector<4x16x16xf32> to vector<4x16xf32>
    %cst_8 = arith.constant 1.600000e+01 : f32
    %14 = vector.broadcast %cst_8 : f32 to vector<4x16xf32>
    %15 = arith.divf %13, %14 : vector<4x16xf32>
    %cst_9 = arith.constant dense<0.000000e+00> : vector<4x16xf32>
    %16 = vector.multi_reduction <add>, %12, %cst_9 [1] : vector<4x16x16xf32> to vector<4x16xf32>
    %cst_10 = arith.constant 1.600000e+01 : f32
    %17 = vector.broadcast %cst_10 : f32 to vector<4x16xf32>
    %18 = arith.divf %16, %17 : vector<4x16xf32>
    %c0_11 = arith.constant 0 : index
    %c0_12 = arith.constant 0 : index
    %19 = vector.load %arg4[%c0_11, %c0_12] : memref<4x4xf32, #tpu.memory_space<vmem>>, vector<4x4xf32>
    %cst_13 = arith.constant dense<0.000000e+00> : vector<4x16xf32>
    %20 = tpu.matmul %19, %15, %cst_13 {dimension_numbers = #tpu.dot_dimension_numbers<[1], [0], [0], [1], [0, 0, 1, 1], [], []>} : vector<4x4xf32>, vector<4x16xf32>, vector<4x16xf32> -> vector<4x16xf32>
    %c0_14 = arith.constant 0 : index
    %c0_15 = arith.constant 0 : index
    %21 = vector.load %arg5[%c0_14, %c0_15] : memref<4x1xf32, #tpu.memory_space<vmem>>, vector<4x1xf32>
    %22 = vector.broadcast %21 : vector<4x1xf32> to vector<4x16xf32>
    %23 = arith.addf %20, %22 : vector<4x16xf32>
    %c0_16 = arith.constant 0 : index
    %c0_17 = arith.constant 0 : index
    %24 = vector.load %arg6[%c0_16, %c0_17] : memref<4x1xf32, #tpu.memory_space<vmem>>, vector<4x1xf32>
    %25 = vector.broadcast %24 : vector<4x1xf32> to vector<4x16xf32>
    %26 = arith.mulf %23, %25 : vector<4x16xf32>
    %c0_18 = arith.constant 0 : index
    %c0_19 = arith.constant 0 : index
    %27 = vector.load %arg7[%c0_18, %c0_19] : memref<4x1xf32, #tpu.memory_space<vmem>>, vector<4x1xf32>
    %28 = vector.broadcast %27 : vector<4x1xf32> to vector<4x16xf32>
    %29 = arith.addf %26, %28 : vector<4x16xf32>
    %cst_20 = arith.constant 3.000000e+00 : f32
    %30 = vector.broadcast %cst_20 : f32 to vector<4x16xf32>
    %31 = arith.addf %29, %30 : vector<4x16xf32>
    %cst_21 = arith.constant 0.000000e+00 : f32
    %cst_22 = arith.constant 6.000000e+00 : f32
    %32 = vector.broadcast %cst_21 : f32 to vector<4x16xf32>
    %33 = arith.maximumf %32, %31 : vector<4x16xf32>
    %34 = vector.broadcast %cst_22 : f32 to vector<4x16xf32>
    %35 = arith.minimumf %34, %33 : vector<4x16xf32>
    %cst_23 = arith.constant 0.166666672 : f32
    %36 = vector.broadcast %cst_23 : f32 to vector<4x16xf32>
    %37 = arith.mulf %35, %36 : vector<4x16xf32>
    %38 = arith.mulf %29, %37 : vector<4x16xf32>
    %c0_24 = arith.constant 0 : index
    %c0_25 = arith.constant 0 : index
    %39 = vector.load %arg4[%c0_24, %c0_25] : memref<4x4xf32, #tpu.memory_space<vmem>>, vector<4x4xf32>
    %cst_26 = arith.constant dense<0.000000e+00> : vector<4x16xf32>
    %40 = tpu.matmul %39, %18, %cst_26 {dimension_numbers = #tpu.dot_dimension_numbers<[1], [0], [0], [1], [0, 0, 1, 1], [], []>} : vector<4x4xf32>, vector<4x16xf32>, vector<4x16xf32> -> vector<4x16xf32>
    %c0_27 = arith.constant 0 : index
    %c0_28 = arith.constant 0 : index
    %41 = vector.load %arg5[%c0_27, %c0_28] : memref<4x1xf32, #tpu.memory_space<vmem>>, vector<4x1xf32>
    %42 = vector.broadcast %41 : vector<4x1xf32> to vector<4x16xf32>
    %43 = arith.addf %40, %42 : vector<4x16xf32>
    %c0_29 = arith.constant 0 : index
    %c0_30 = arith.constant 0 : index
    %44 = vector.load %arg6[%c0_29, %c0_30] : memref<4x1xf32, #tpu.memory_space<vmem>>, vector<4x1xf32>
    %45 = vector.broadcast %44 : vector<4x1xf32> to vector<4x16xf32>
    %46 = arith.mulf %43, %45 : vector<4x16xf32>
    %c0_31 = arith.constant 0 : index
    %c0_32 = arith.constant 0 : index
    %47 = vector.load %arg7[%c0_31, %c0_32] : memref<4x1xf32, #tpu.memory_space<vmem>>, vector<4x1xf32>
    %48 = vector.broadcast %47 : vector<4x1xf32> to vector<4x16xf32>
    %49 = arith.addf %46, %48 : vector<4x16xf32>
    %cst_33 = arith.constant 3.000000e+00 : f32
    %50 = vector.broadcast %cst_33 : f32 to vector<4x16xf32>
    %51 = arith.addf %49, %50 : vector<4x16xf32>
    %cst_34 = arith.constant 0.000000e+00 : f32
    %cst_35 = arith.constant 6.000000e+00 : f32
    %52 = vector.broadcast %cst_34 : f32 to vector<4x16xf32>
    %53 = arith.maximumf %52, %51 : vector<4x16xf32>
    %54 = vector.broadcast %cst_35 : f32 to vector<4x16xf32>
    %55 = arith.minimumf %54, %53 : vector<4x16xf32>
    %cst_36 = arith.constant 0.166666672 : f32
    %56 = vector.broadcast %cst_36 : f32 to vector<4x16xf32>
    %57 = arith.mulf %55, %56 : vector<4x16xf32>
    %58 = arith.mulf %49, %57 : vector<4x16xf32>
    %c0_37 = arith.constant 0 : index
    %c0_38 = arith.constant 0 : index
    %59 = vector.load %arg8[%c0_37, %c0_38] : memref<8x4xf32, #tpu.memory_space<vmem>>, vector<8x4xf32>
    %cst_39 = arith.constant dense<0.000000e+00> : vector<8x16xf32>
    %60 = tpu.matmul %59, %38, %cst_39 {dimension_numbers = #tpu.dot_dimension_numbers<[1], [0], [0], [1], [0, 0, 1, 1], [], []>} : vector<8x4xf32>, vector<4x16xf32>, vector<8x16xf32> -> vector<8x16xf32>
    %c0_40 = arith.constant 0 : index
    %c0_41 = arith.constant 0 : index
    %61 = vector.load %arg9[%c0_40, %c0_41] : memref<8x1xf32, #tpu.memory_space<vmem>>, vector<8x1xf32>
    %62 = vector.broadcast %61 : vector<8x1xf32> to vector<8x16xf32>
    %63 = arith.addf %60, %62 : vector<8x16xf32>
    %64 = arith.negf %63 : vector<8x16xf32>
    %65 = math.exp %64 : vector<8x16xf32>
    %cst_42 = arith.constant 1.000000e+00 : f32
    %66 = vector.broadcast %cst_42 : f32 to vector<8x16xf32>
    %67 = arith.addf %66, %65 : vector<8x16xf32>
    %68 = arith.divf %66, %67 : vector<8x16xf32>
    %c0_43 = arith.constant 0 : index
    %c0_44 = arith.constant 0 : index
    %69 = vector.load %arg10[%c0_43, %c0_44] : memref<8x4xf32, #tpu.memory_space<vmem>>, vector<8x4xf32>
    %cst_45 = arith.constant dense<0.000000e+00> : vector<8x16xf32>
    %70 = tpu.matmul %69, %58, %cst_45 {dimension_numbers = #tpu.dot_dimension_numbers<[1], [0], [0], [1], [0, 0, 1, 1], [], []>} : vector<8x4xf32>, vector<4x16xf32>, vector<8x16xf32> -> vector<8x16xf32>
    %c0_46 = arith.constant 0 : index
    %c0_47 = arith.constant 0 : index
    %71 = vector.load %arg11[%c0_46, %c0_47] : memref<8x1xf32, #tpu.memory_space<vmem>>, vector<8x1xf32>
    %72 = vector.broadcast %71 : vector<8x1xf32> to vector<8x16xf32>
    %73 = arith.addf %70, %72 : vector<8x16xf32>
    %74 = arith.negf %73 : vector<8x16xf32>
    %75 = math.exp %74 : vector<8x16xf32>
    %cst_48 = arith.constant 1.000000e+00 : f32
    %76 = vector.broadcast %cst_48 : f32 to vector<8x16xf32>
    %77 = arith.addf %76, %75 : vector<8x16xf32>
    %78 = arith.divf %76, %77 : vector<8x16xf32>
    %79 = vector.shape_cast %68 : vector<8x16xf32> to vector<8x16x1xf32>
    %80 = vector.shape_cast %78 : vector<8x16xf32> to vector<8x1x16xf32>
    %81 = vector.broadcast %79 : vector<8x16x1xf32> to vector<8x16x16xf32>
    %82 = vector.broadcast %80 : vector<8x1x16xf32> to vector<8x16x16xf32>
    %83 = arith.mulf %81, %82 : vector<8x16x16xf32>
    %84 = vector.shape_cast %83 : vector<8x16x16xf32> to vector<8x256xf32>
    %85 = arith.mulf %11, %84 : vector<8x256xf32>
    %c0_49 = arith.constant 0 : index
    %c0_50 = arith.constant 0 : index
    %86 = vector.load %arg12[%c0_49, %c0_50] : memref<8x8xf32, #tpu.memory_space<vmem>>, vector<8x8xf32>
    %cst_51 = arith.constant dense<0.000000e+00> : vector<8x256xf32>
    %87 = tpu.matmul %86, %85, %cst_51 {dimension_numbers = #tpu.dot_dimension_numbers<[1], [0], [0], [1], [0, 0, 1, 1], [], []>} : vector<8x8xf32>, vector<8x256xf32>, vector<8x256xf32> -> vector<8x256xf32>
    %c0_52 = arith.constant 0 : index
    %c0_53 = arith.constant 0 : index
    %88 = vector.load %arg13[%c0_52, %c0_53] : memref<8x1xf32, #tpu.memory_space<vmem>>, vector<8x1xf32>
    %89 = vector.broadcast %88 : vector<8x1xf32> to vector<8x256xf32>
    %90 = arith.addf %87, %89 : vector<8x256xf32>
    %91 = arith.negf %90 : vector<8x256xf32>
    %92 = math.exp %91 : vector<8x256xf32>
    %cst_54 = arith.constant 1.000000e+00 : f32
    %93 = vector.broadcast %cst_54 : f32 to vector<8x256xf32>
    %94 = arith.addf %93, %92 : vector<8x256xf32>
    %95 = arith.divf %93, %94 : vector<8x256xf32>
    %c0_55 = arith.constant 0 : index
    %c0_56 = arith.constant 0 : index
    %c0_57 = arith.constant 0 : index
    %96 = vector.load %arg14[%c0_55, %c0_56, %c0_57] : memref<1x8x256xf32, #tpu.memory_space<vmem>>, vector<1x8x256xf32>
    %97 = vector.shape_cast %96 : vector<1x8x256xf32> to vector<8x256xf32>
    %98 = vector.shape_cast %95 : vector<8x256xf32> to vector<1x8x256xf32>
    tpu.vector_store %arg14[%c0_55, %c0_56, %c0_57], %98 {strides = array<i32>} : memref<1x8x256xf32, #tpu.memory_space<vmem>>, vector<1x8x256xf32>,
    return
  }
  func.func @transform_0(%arg0: i32) -> (i32, i32, i32) {
    %c0_i32 = arith.constant 0 : i32
    %c0_i32_0 = arith.constant 0 : i32
    %c0_i32_1 = arith.constant 0 : i32
    return %arg0, %c0_i32, %c0_i32_0 : i32, i32, i32
  }
  func.func @transform_1(%arg0: i32) -> (i32, i32) {
    %c0_i32 = arith.constant 0 : i32
    %c0_i32_0 = arith.constant 0 : i32
    %c0_i32_1 = arith.constant 0 : i32
    return %c0_i32, %c0_i32_0 : i32, i32
  }
  func.func @transform_2(%arg0: i32) -> (i32, i32) {
    %c0_i32 = arith.constant 0 : i32
    %c0_i32_0 = arith.constant 0 : i32
    %c0_i32_1 = arith.constant 0 : i32
    return %c0_i32, %c0_i32_0 : i32, i32
  }
  func.func @transform_3(%arg0: i32) -> (i32, i32) {
    %c0_i32 = arith.constant 0 : i32
    %c0_i32_0 = arith.constant 0 : i32
    %c0_i32_1 = arith.constant 0 : i32
    return %c0_i32, %c0_i32_0 : i32, i32
  }
  func.func @transform_4(%arg0: i32) -> (i32, i32) {
    %c0_i32 = arith.constant 0 : i32
    %c0_i32_0 = arith.constant 0 : i32
    %c0_i32_1 = arith.constant 0 : i32
    return %c0_i32, %c0_i32_0 : i32, i32
  }
  func.func @transform_5(%arg0: i32) -> (i32, i32) {
    %c0_i32 = arith.constant 0 : i32
    %c0_i32_0 = arith.constant 0 : i32
    %c0_i32_1 = arith.constant 0 : i32
    return %c0_i32, %c0_i32_0 : i32, i32
  }
  func.func @transform_6(%arg0: i32) -> (i32, i32) {
    %c0_i32 = arith.constant 0 : i32
    %c0_i32_0 = arith.constant 0 : i32
    %c0_i32_1 = arith.constant 0 : i32
    return %c0_i32, %c0_i32_0 : i32, i32
  }
  func.func @transform_7(%arg0: i32) -> (i32, i32) {
    %c0_i32 = arith.constant 0 : i32
    %c0_i32_0 = arith.constant 0 : i32
    %c0_i32_1 = arith.constant 0 : i32
    return %c0_i32, %c0_i32_0 : i32, i32
  }
  func.func @transform_8(%arg0: i32) -> (i32, i32) {
    %c0_i32 = arith.constant 0 : i32
    %c0_i32_0 = arith.constant 0 : i32
    %c0_i32_1 = arith.constant 0 : i32
    return %c0_i32, %c0_i32_0 : i32, i32
  }
  func.func @transform_9(%arg0: i32) -> (i32, i32) {
    %c0_i32 = arith.constant 0 : i32
    %c0_i32_0 = arith.constant 0 : i32
    %c0_i32_1 = arith.constant 0 : i32
    return %c0_i32, %c0_i32_0 : i32, i32
  }
  func.func @transform_10(%arg0: i32) -> (i32, i32) {
    %c0_i32 = arith.constant 0 : i32
    %c0_i32_0 = arith.constant 0 : i32
    %c0_i32_1 = arith.constant 0 : i32
    return %c0_i32, %c0_i32_0 : i32, i32
  }
  func.func @transform_11(%arg0: i32) -> (i32, i32) {
    %c0_i32 = arith.constant 0 : i32
    %c0_i32_0 = arith.constant 0 : i32
    %c0_i32_1 = arith.constant 0 : i32
    return %c0_i32, %c0_i32_0 : i32, i32
  }
  func.func @transform_12(%arg0: i32) -> (i32, i32) {
    %c0_i32 = arith.constant 0 : i32
    %c0_i32_0 = arith.constant 0 : i32
    %c0_i32_1 = arith.constant 0 : i32
    return %c0_i32, %c0_i32_0 : i32, i32
  }
  func.func @transform_13(%arg0: i32) -> (i32, i32, i32) {
    %c0_i32 = arith.constant 0 : i32
    %c0_i32_0 = arith.constant 0 : i32
    %c0_i32_1 = arith.constant 0 : i32
    return %arg0, %c0_i32, %c0_i32_0 : i32, i32, i32
  }
}

</mosaic_0001>

<llo_original>
// kernel: tpu_custom_call.1
$region0: #{tpu_custom_call.1}
  #allocation0 [shape = 'u32[]', space=smem, size = 0x4, offset = 0x4, fixed_abs, tag = 'smem constant byte address 0x4 - core index']
  #allocation1 [shape = 'u32[72,128]{1,0:T(1,128)}', space=vmem, size = 0x9000, scoped, tag = 'internal scratch']
  %s0 = inlined_call_operand.vmem [shape: f32[2,4,256], index: 0, kind: input, shape index: {}]
  %s1 = inlined_call_operand.vmem [shape: f32[8,4], index: 1, kind: input, shape index: {}]
  %s2 = inlined_call_operand.vmem [shape: f32[8,1], index: 2, kind: input, shape index: {}]
  %s3 = inlined_call_operand.vmem [shape: f32[4,4], index: 3, kind: input, shape index: {}]
  %s4 = inlined_call_operand.vmem [shape: f32[4,1], index: 4, kind: input, shape index: {}]
  %s5 = inlined_call_operand.vmem [shape: f32[4,1], index: 5, kind: input, shape index: {}]
  %s6 = inlined_call_operand.vmem [shape: f32[4,1], index: 6, kind: input, shape index: {}]
  %s7 = inlined_call_operand.vmem [shape: f32[8,4], index: 7, kind: input, shape index: {}]
  %s8 = inlined_call_operand.vmem [shape: f32[8,1], index: 8, kind: input, shape index: {}]
  %s9 = inlined_call_operand.vmem [shape: f32[8,4], index: 9, kind: input, shape index: {}]
  %s10 = inlined_call_operand.vmem [shape: f32[8,1], index: 10, kind: input, shape index: {}]
  %s11 = inlined_call_operand.vmem [shape: f32[8,8], index: 11, kind: input, shape index: {}]
  %s12 = inlined_call_operand.vmem [shape: f32[8,1], index: 12, kind: input, shape index: {}]
  %s13 = inlined_call_operand.hbm [shape: f32[2,8,256], index: 13, kind: output, shape index: {}]
  %s14 = sld [smem:[#allocation0]]
  $region85: #{tpu_custom_call.1} parent=0
    _
  %s16 = ssub.s32 1, %s14
  %s17 = scalar_select 0, %s16, %s14
  $region1: #{tpu_custom_call.1} parent=0
    #allocation2 [shape = 'u8[16384]{0}', space=vmem, size = 0x4000, scoped, tag = 'output window, operand 0']
    #allocation3 [shape = 's32[2]{0}', space=sflag, size = 0x8, scoped, tag = 'scoped memory for tpu_custom_call.1']
    %18 = vsyncpa [#allocation3], 0
    %s19 = scalar_lea.sflag [#allocation3], 1
    %20 = vsyncpa %s19, 0
    loop: start=0, step=1, limit=4
    $region2: #{tpu_custom_call.1} parent=1 // loop_pre_header
      _
    $region3: #{tpu_custom_call.1} parent=1 // loop_header
      %s22 = sphi 0, %s26
      %p23 = scmp.ge.s32.totalorder %s22, 4
      %s32 = sphi 0, %s34
      %s35 = sphi 0, %s32
      %s36 = sphi 0, %s35
      %s52 = sphi 0, %s36
      %s56 = sphi 0, %s56
      %s58 = sphi 0, %s56
      %s59 = sphi 0, %s58
      %s73 = sphi 0, %s59
      %s77 = sphi 0, %s77
      %s79 = sphi 0, %s77
      %s80 = sphi 0, %s79
      %s94 = sphi 0, %s80
      %s98 = sphi 0, %s98
      %s100 = sphi 0, %s98
      %s101 = sphi 0, %s100
      %s115 = sphi 0, %s101
      %s119 = sphi 0, %s119
      %s121 = sphi 0, %s119
      %s122 = sphi 0, %s121
      %s136 = sphi 0, %s122
      %s140 = sphi 0, %s140
      %s142 = sphi 0, %s140
      %s143 = sphi 0, %s142
      %s157 = sphi 0, %s143
      %s161 = sphi 0, %s161
      %s163 = sphi 0, %s161
      %s164 = sphi 0, %s163
      %s178 = sphi 0, %s164
      %s182 = sphi 0, %s182
      %s184 = sphi 0, %s182
      %s185 = sphi 0, %s184
      %s199 = sphi 0, %s185
      %s203 = sphi 0, %s203
      %s205 = sphi 0, %s203
      %s206 = sphi 0, %s205
      %s220 = sphi 0, %s206
      %s224 = sphi 0, %s224
      %s226 = sphi 0, %s224
      %s227 = sphi 0, %s226
      %s241 = sphi 0, %s227
      %s245 = sphi 0, %s245
      %s247 = sphi 0, %s245
      %s248 = sphi 0, %s247
      %s262 = sphi 0, %s248
      %s266 = sphi 0, %s266
      %s268 = sphi 0, %s266
      %s269 = sphi 0, %s268
      %s283 = sphi 0, %s269
      %s287 = sphi 0, %s287
      %s289 = sphi 0, %s287
      %s290 = sphi 0, %s289
      %s304 = sphi 0, %s290
      %s310 = sphi 0, %s312
      %s313 = sphi 0, %s310
      %s314 = sphi 0, %s313
      %s330 = sphi 0, %s314
    $region4: #{tpu_custom_call.1} parent=1 // loop_header_branch
      %25 = sbr.rel (%p23) target = $region8
    $region5: #{tpu_custom_call.1} parent=1 // loop_body
      %s27 = ssub.s32 %s22, 1
      %s28 = ssub.s32 %s22, 2
      %s29 = sadd.s32 %s22, 1
      %s30 = ssub.s32 %s22, %s29
      %p31 = scmp.eq.s32.totalorder %s30, 0
      %s33 = sadd.s32 %s32, 1
      %s34 = scalar_select %p31, %s32, %s33
      %p37 = pneg %p31
      %p38 = scmp.eq.s32.totalorder %s22, 1
      %p39 = por %p37, %p38
      %p40 = scmp.ne.s32.totalorder %s32, %s35
      %p41 = scmp.eq.s32.totalorder %s22, 0
      %p42 = por %p40, %p41
      %p43 = scmp.ne.s32.totalorder %s32, %s35
      %p44 = scmp.eq.s32.totalorder %s27, 1
      %p45 = por %p43, %p44
      %p46 = scmp.ne.s32.totalorder %s35, %s36
      %p47 = scmp.eq.s32.totalorder %s27, 0
      %p48 = por %p46, %p47
      %p49 = scmp.ne.s32.totalorder %s35, %s36
      %p50 = scmp.eq.s32.totalorder %s28, 1
      %p51 = por %p49, %p50
      %p53 = scmp.ne.s32.totalorder %s36, %s52
      %p54 = scmp.eq.s32.totalorder %s28, 0
      %p55 = por %p53, %p54
      %s57 = sadd.s32 %s56, 1
      %p60 = scmp.eq.s32.totalorder %s22, 1
      %p61 = scmp.ne.s32.totalorder %s56, %s58
      %p62 = scmp.eq.s32.totalorder %s22, 0
      %p63 = por %p61, %p62
      %p64 = scmp.ne.s32.totalorder %s56, %s58
      %p65 = scmp.eq.s32.totalorder %s27, 1
      %p66 = por %p64, %p65
      %p67 = scmp.ne.s32.totalorder %s58, %s59
      %p68 = scmp.eq.s32.totalorder %s27, 0
      %p69 = por %p67, %p68
      %p70 = scmp.ne.s32.totalorder %s58, %s59
      %p71 = scmp.eq.s32.totalorder %s28, 1
      %p72 = por %p70, %p71
      %p74 = scmp.ne.s32.totalorder %s59, %s73
      %p75 = scmp.eq.s32.totalorder %s28, 0
      %p76 = por %p74, %p75
      %s78 = sadd.s32 %s77, 1
      %p81 = scmp.eq.s32.totalorder %s22, 1
      %p82 = scmp.ne.s32.totalorder %s77, %s79
      %p83 = scmp.eq.s32.totalorder %s22, 0
      %p84 = por %p82, %p83
      %p85 = scmp.ne.s32.totalorder %s77, %s79
      %p86 = scmp.eq.s32.totalorder %s27, 1
      %p87 = por %p85, %p86
      %p88 = scmp.ne.s32.totalorder %s79, %s80
      %p89 = scmp.eq.s32.totalorder %s27, 0
      %p90 = por %p88, %p89
      %p91 = scmp.ne.s32.totalorder %s79, %s80
      %p92 = scmp.eq.s32.totalorder %s28, 1
      %p93 = por %p91, %p92
      %p95 = scmp.ne.s32.totalorder %s80, %s94
      %p96 = scmp.eq.s32.totalorder %s28, 0
      %p97 = por %p95, %p96
      %s99 = sadd.s32 %s98, 1
      %p102 = scmp.eq.s32.totalorder %s22, 1
      %p103 = scmp.ne.s32.totalorder %s98, %s100
      %p104 = scmp.eq.s32.totalorder %s22, 0
      %p105 = por %p103, %p104
      %p106 = scmp.ne.s32.totalorder %s98, %s100
      %p107 = scmp.eq.s32.totalorder %s27, 1
      %p108 = por %p106, %p107
      %p109 = scmp.ne.s32.totalorder %s100, %s101
      %p110 = scmp.eq.s32.totalorder %s27, 0
      %p111 = por %p109, %p110
      %p112 = scmp.ne.s32.totalorder %s100, %s101
      %p113 = scmp.eq.s32.totalorder %s28, 1
      %p114 = por %p112, %p113
      %p116 = scmp.ne.s32.totalorder %s101, %s115
      %p117 = scmp.eq.s32.totalorder %s28, 0
      %p118 = por %p116, %p117
      %s120 = sadd.s32 %s119, 1
      %p123 = scmp.eq.s32.totalorder %s22, 1
      %p124 = scmp.ne.s32.totalorder %s119, %s121
      %p125 = scmp.eq.s32.totalorder %s22, 0
      %p126 = por %p124, %p125
      %p127 = scmp.ne.s32.totalorder %s119, %s121
      %p128 = scmp.eq.s32.totalorder %s27, 1
      %p129 = por %p127, %p128
      %p130 = scmp.ne.s32.totalorder %s121, %s122
      %p131 = scmp.eq.s32.totalorder %s27, 0
      %p132 = por %p130, %p131
      %p133 = scmp.ne.s32.totalorder %s121, %s122
      %p134 = scmp.eq.s32.totalorder %s28, 1
      %p135 = por %p133, %p134
      %p137 = scmp.ne.s32.totalorder %s122, %s136
      %p138 = scmp.eq.s32.totalorder %s28, 0
      %p139 = por %p137, %p138
      %s141 = sadd.s32 %s140, 1
      %p144 = scmp.eq.s32.totalorder %s22, 1
      %p145 = scmp.ne.s32.totalorder %s140, %s142
      %p146 = scmp.eq.s32.totalorder %s22, 0
      %p147 = por %p145, %p146
      %p148 = scmp.ne.s32.totalorder %s140, %s142
      %p149 = scmp.eq.s32.totalorder %s27, 1
      %p150 = por %p148, %p149
      %p151 = scmp.ne.s32.totalorder %s142, %s143
      %p152 = scmp.eq.s32.totalorder %s27, 0
      %p153 = por %p151, %p152
      %p154 = scmp.ne.s32.totalorder %s142, %s143
      %p155 = scmp.eq.s32.totalorder %s28, 1
      %p156 = por %p154, %p155
      %p158 = scmp.ne.s32.totalorder %s143, %s157
      %p159 = scmp.eq.s32.totalorder %s28, 0
      %p160 = por %p158, %p159
      %s162 = sadd.s32 %s161, 1
      %p165 = scmp.eq.s32.totalorder %s22, 1
      %p166 = scmp.ne.s32.totalorder %s161, %s163
      %p167 = scmp.eq.s32.totalorder %s22, 0
      %p168 = por %p166, %p167
      %p169 = scmp.ne.s32.totalorder %s161, %s163
      %p170 = scmp.eq.s32.totalorder %s27, 1
      %p171 = por %p169, %p170
      %p172 = scmp.ne.s32.totalorder %s163, %s164
      %p173 = scmp.eq.s32.totalorder %s27, 0
      %p174 = por %p172, %p173
      %p175 = scmp.ne.s32.totalorder %s163, %s164
      %p176 = scmp.eq.s32.totalorder %s28, 1
      %p177 = por %p175, %p176
      %p179 = scmp.ne.s32.totalorder %s164, %s178
      %p180 = scmp.eq.s32.totalorder %s28, 0
      %p181 = por %p179, %p180
      %s183 = sadd.s32 %s182, 1
      %p186 = scmp.eq.s32.totalorder %s22, 1
      %p187 = scmp.ne.s32.totalorder %s182, %s184
      %p188 = scmp.eq.s32.totalorder %s22, 0
      %p189 = por %p187, %p188
      %p190 = scmp.ne.s32.totalorder %s182, %s184
      %p191 = scmp.eq.s32.totalorder %s27, 1
      %p192 = por %p190, %p191
      %p193 = scmp.ne.s32.totalorder %s184, %s185
      %p194 = scmp.eq.s32.totalorder %s27, 0
      %p195 = por %p193, %p194
      %p196 = scmp.ne.s32.totalorder %s184, %s185
      %p197 = scmp.eq.s32.totalorder %s28, 1
      %p198 = por %p196, %p197
      %p200 = scmp.ne.s32.totalorder %s185, %s199
      %p201 = scmp.eq.s32.totalorder %s28, 0
      %p202 = por %p200, %p201
      %s204 = sadd.s32 %s203, 1
      %p207 = scmp.eq.s32.totalorder %s22, 1
      %p208 = scmp.ne.s32.totalorder %s203, %s205
      %p209 = scmp.eq.s32.totalorder %s22, 0
      %p210 = por %p208, %p209
      %p211 = scmp.ne.s32.totalorder %s203, %s205
      %p212 = scmp.eq.s32.totalorder %s27, 1
      %p213 = por %p211, %p212
      %p214 = scmp.ne.s32.totalorder %s205, %s206
      %p215 = scmp.eq.s32.totalorder %s27, 0
      %p216 = por %p214, %p215
      %p217 = scmp.ne.s32.totalorder %s205, %s206
      %p218 = scmp.eq.s32.totalorder %s28, 1
      %p219 = por %p217, %p218
      %p221 = scmp.ne.s32.totalorder %s206, %s220
      %p222 = scmp.eq.s32.totalorder %s28, 0
      %p223 = por %p221, %p222
      %s225 = sadd.s32 %s224, 1
      %p228 = scmp.eq.s32.totalorder %s22, 1
      %p229 = scmp.ne.s32.totalorder %s224, %s226
      %p230 = scmp.eq.s32.totalorder %s22, 0
      %p231 = por %p229, %p230
      %p232 = scmp.ne.s32.totalorder %s224, %s226
      %p233 = scmp.eq.s32.totalorder %s27, 1
      %p234 = por %p232, %p233
      %p235 = scmp.ne.s32.totalorder %s226, %s227
      %p236 = scmp.eq.s32.totalorder %s27, 0
      %p237 = por %p235, %p236
      %p238 = scmp.ne.s32.totalorder %s226, %s227
      %p239 = scmp.eq.s32.totalorder %s28, 1
      %p240 = por %p238, %p239
      %p242 = scmp.ne.s32.totalorder %s227, %s241
      %p243 = scmp.eq.s32.totalorder %s28, 0
      %p244 = por %p242, %p243
      %s246 = sadd.s32 %s245, 1
      %p249 = scmp.eq.s32.totalorder %s22, 1
      %p250 = scmp.ne.s32.totalorder %s245, %s247
      %p251 = scmp.eq.s32.totalorder %s22, 0
      %p252 = por %p250, %p251
      %p253 = scmp.ne.s32.totalorder %s245, %s247
      %p254 = scmp.eq.s32.totalorder %s27, 1
      %p255 = por %p253, %p254
      %p256 = scmp.ne.s32.totalorder %s247, %s248
      %p257 = scmp.eq.s32.totalorder %s27, 0
      %p258 = por %p256, %p257
      %p259 = scmp.ne.s32.totalorder %s247, %s248
      %p260 = scmp.eq.s32.totalorder %s28, 1
      %p261 = por %p259, %p260
      %p263 = scmp.ne.s32.totalorder %s248, %s262
      %p264 = scmp.eq.s32.totalorder %s28, 0
      %p265 = por %p263, %p264
      %s267 = sadd.s32 %s266, 1
      %p270 = scmp.eq.s32.totalorder %s22, 1
      %p271 = scmp.ne.s32.totalorder %s266, %s268
      %p272 = scmp.eq.s32.totalorder %s22, 0
      %p273 = por %p271, %p272
      %p274 = scmp.ne.s32.totalorder %s266, %s268
      %p275 = scmp.eq.s32.totalorder %s27, 1
      %p276 = por %p274, %p275
      %p277 = scmp.ne.s32.totalorder %s268, %s269
      %p278 = scmp.eq.s32.totalorder %s27, 0
      %p279 = por %p277, %p278
      %p280 = scmp.ne.s32.totalorder %s268, %s269
      %p281 = scmp.eq.s32.totalorder %s28, 1
      %p282 = por %p280, %p281
      %p284 = scmp.ne.s32.totalorder %s269, %s283
      %p285 = scmp.eq.s32.totalorder %s28, 0
      %p286 = por %p284, %p285
      %s288 = sadd.s32 %s287, 1
      %p291 = scmp.eq.s32.totalorder %s22, 1
      %p292 = scmp.ne.s32.totalorder %s287, %s289
      %p293 = scmp.eq.s32.totalorder %s22, 0
      %p294 = por %p292, %p293
      %p295 = scmp.ne.s32.totalorder %s287, %s289
      %p296 = scmp.eq.s32.totalorder %s27, 1
      %p297 = por %p295, %p296
      %p298 = scmp.ne.s32.totalorder %s289, %s290
      %p299 = scmp.eq.s32.totalorder %s27, 0
      %p300 = por %p298, %p299
      %p301 = scmp.ne.s32.totalorder %s289, %s290
      %p302 = scmp.eq.s32.totalorder %s28, 1
      %p303 = por %p301, %p302
      %p305 = scmp.ne.s32.totalorder %s290, %s304
      %p306 = scmp.eq.s32.totalorder %s28, 0
      %p307 = por %p305, %p306
      %s308 = ssub.s32 %s22, %s29
      %p309 = scmp.eq.s32.totalorder %s308, 0
      %s311 = sadd.s32 %s310, 1
      %s312 = scalar_select %p309, %s310, %s311
      %p315 = pneg %p309
      %p316 = scmp.eq.s32.totalorder %s22, 1
      %p317 = por %p315, %p316
      %p318 = scmp.ne.s32.totalorder %s310, %s313
      %p319 = scmp.eq.s32.totalorder %s22, 0
      %p320 = por %p318, %p319
      %p321 = scmp.ne.s32.totalorder %s310, %s313
      %p322 = scmp.eq.s32.totalorder %s27, 1
      %p323 = por %p321, %p322
      %p324 = scmp.ne.s32.totalorder %s313, %s314
      %p325 = scmp.eq.s32.totalorder %s27, 0
      %p326 = por %p324, %p325
      %p327 = scmp.ne.s32.totalorder %s313, %s314
      %p328 = scmp.eq.s32.totalorder %s28, 1
      %p329 = por %p327, %p328
      %p331 = scmp.ne.s32.totalorder %s314, %s330
      %p332 = scmp.eq.s32.totalorder %s28, 0
      %p333 = por %p331, %p332
      %p334 = scmp.le.s32.totalorder 1, %s22
      %p335 = scmp.lt.s32.totalorder %s22, 3
      %p336 = pnand %p334, %p335
      %p337 = pneg %p336
      // Predicated region
      $region9: #{tpu_custom_call.1} parent=5 // pred_check
        _
      $region10: #{tpu_custom_call.1} parent=5 // pred_check_branch
        %339 = sbr.rel (%p336) target = $region12
      $region11: #{tpu_custom_call.1} parent=5 // pred_region
        %s340 = ssub.s32 %s22, 1
        // Predicated region
        $region13: #{tpu_custom_call.1} parent=11 // pred_check
          %p341 = pneg %p69
        $region14: #{tpu_custom_call.1} parent=11 // pred_check_branch
          %343 = sbr.rel (%p341) target = $region16
        $region15: #{tpu_custom_call.1} parent=11 // pred_region
          _
        $region16: #{tpu_custom_call.1} parent=11 // pred_fallthru
          _
        // Predicated region
        $region17: #{tpu_custom_call.1} parent=11 // pred_check
          %p344 = pneg %p90
        $region18: #{tpu_custom_call.1} parent=11 // pred_check_branch
          %346 = sbr.rel (%p344) target = $region20
        $region19: #{tpu_custom_call.1} parent=11 // pred_region
          _
        $region20: #{tpu_custom_call.1} parent=11 // pred_fallthru
          _
        // Predicated region
        $region21: #{tpu_custom_call.1} parent=11 // pred_check
          %p347 = pneg %p111
        $region22: #{tpu_custom_call.1} parent=11 // pred_check_branch
          %349 = sbr.rel (%p347) target = $region24
        $region23: #{tpu_custom_call.1} parent=11 // pred_region
          _
        $region24: #{tpu_custom_call.1} parent=11 // pred_fallthru
          _
        // Predicated region
        $region25: #{tpu_custom_call.1} parent=11 // pred_check
          %p350 = pneg %p132
        $region26: #{tpu_custom_call.1} parent=11 // pred_check_branch
          %352 = sbr.rel (%p350) target = $region28
        $region27: #{tpu_custom_call.1} parent=11 // pred_region
          _
        $region28: #{tpu_custom_call.1} parent=11 // pred_fallthru
          _
        // Predicated region
        $region29: #{tpu_custom_call.1} parent=11 // pred_check
          %p353 = pneg %p153
        $region30: #{tpu_custom_call.1} parent=11 // pred_check_branch
          %355 = sbr.rel (%p353) target = $region32
        $region31: #{tpu_custom_call.1} parent=11 // pred_region
          _
        $region32: #{tpu_custom_call.1} parent=11 // pred_fallthru
          _
        // Predicated region
        $region33: #{tpu_custom_call.1} parent=11 // pred_check
          %p356 = pneg %p174
        $region34: #{tpu_custom_call.1} parent=11 // pred_check_branch
          %358 = sbr.rel (%p356) target = $region36
        $region35: #{tpu_custom_call.1} parent=11 // pred_region
          _
        $region36: #{tpu_custom_call.1} parent=11 // pred_fallthru
          _
        // Predicated region
        $region37: #{tpu_custom_call.1} parent=11 // pred_check
          %p359 = pneg %p195
        $region38: #{tpu_custom_call.1} parent=11 // pred_check_branch
          %361 = sbr.rel (%p359) target = $region40
        $region39: #{tpu_custom_call.1} parent=11 // pred_region
          _
        $region40: #{tpu_custom_call.1} parent=11 // pred_fallthru
          _
        // Predicated region
        $region41: #{tpu_custom_call.1} parent=11 // pred_check
          %p362 = pneg %p216
        $region42: #{tpu_custom_call.1} parent=11 // pred_check_branch
          %364 = sbr.rel (%p362) target = $region44
        $region43: #{tpu_custom_call.1} parent=11 // pred_region
          _
        $region44: #{tpu_custom_call.1} parent=11 // pred_fallthru
          _
        // Predicated region
        $region45: #{tpu_custom_call.1} parent=11 // pred_check
          %p365 = pneg %p237
        $region46: #{tpu_custom_call.1} parent=11 // pred_check_branch
          %367 = sbr.rel (%p365) target = $region48
        $region47: #{tpu_custom_call.1} parent=11 // pred_region
          _
        $region48: #{tpu_custom_call.1} parent=11 // pred_fallthru
          _
        // Predicated region
        $region49: #{tpu_custom_call.1} parent=11 // pred_check
          %p368 = pneg %p258
        $region50: #{tpu_custom_call.1} parent=11 // pred_check_branch
          %370 = sbr.rel (%p368) target = $region52
        $region51: #{tpu_custom_call.1} parent=11 // pred_region
          _
        $region52: #{tpu_custom_call.1} parent=11 // pred_fallthru
          _
        // Predicated region
        $region53: #{tpu_custom_call.1} parent=11 // pred_check
          %p371 = pneg %p279
        $region54: #{tpu_custom_call.1} parent=11 // pred_check_branch
          %373 = sbr.rel (%p371) target = $region56
        $region55: #{tpu_custom_call.1} parent=11 // pred_region
          _
        $region56: #{tpu_custom_call.1} parent=11 // pred_fallthru
          _
        // Predicated region
        $region57: #{tpu_custom_call.1} parent=11 // pred_check
          %p374 = pneg %p300
        $region58: #{tpu_custom_call.1} parent=11 // pred_check_branch
          %376 = sbr.rel (%p374) target = $region60
        $region59: #{tpu_custom_call.1} parent=11 // pred_region
          _
        $region60: #{tpu_custom_call.1} parent=11 // pred_fallthru
          _
      $region12: #{tpu_custom_call.1} parent=5 // pred_fallthru
        _
      %p377 = scmp.lt.s32.totalorder %s22, 2
      // Predicated region
      $region61: #{tpu_custom_call.1} parent=5 // pred_check
        %p378 = pneg %p377
      $region62: #{tpu_custom_call.1} parent=5 // pred_check_branch
        %380 = sbr.rel (%p378) target = $region64
      $region63: #{tpu_custom_call.1} parent=5 // pred_region
        // Predicated region
        $region65: #{tpu_custom_call.1} parent=63 // pred_check
          %p381 = pneg %p42
        $region66: #{tpu_custom_call.1} parent=63 // pred_check_branch
          %383 = sbr.rel (%p381) target = $region68
        $region67: #{tpu_custom_call.1} parent=63 // pred_region
          %p384 = scmp.lt.s32.totalorder %s22, 1
          %s385 = scalar_select %p384, %s22, 1
          %s386 = smul.addr %s385, 2
          %s387 = smul.addr %s386, 4
          %s388 = scalar_lea.vmem %s0, %s387
        $region68: #{tpu_custom_call.1} parent=63 // pred_fallthru
          _
      $region64: #{tpu_custom_call.1} parent=5 // pred_fallthru
        _
      %p389 = scmp.le.s32.totalorder 1, %s22
      %p390 = scmp.lt.s32.totalorder %s22, 3
      %p391 = pnand %p389, %p390
      %p392 = pneg %p391
      // Predicated region
      $region69: #{tpu_custom_call.1} parent=5 // pred_check
        _
      $region70: #{tpu_custom_call.1} parent=5 // pred_check_branch
        %394 = sbr.rel (%p391) target = $region72
      $region71: #{tpu_custom_call.1} parent=5 // pred_region
        %s395 = ssub.s32 %s22, 1
        %p396 = scmp.lt.s32.totalorder %s27, 1
        %s397 = scalar_select %p396, %s27, 1
        %s398 = smul.addr %s397, 2
        %s399 = smul.addr %s398, 4
        %s400 = scalar_lea.vmem %s0, %s399
        %p401 = pneg %p48
        %p402 = pneg %p45
        %p403 = pneg %p69
        %p404 = pneg %p66
        %p405 = pneg %p90
        %p406 = pneg %p87
        %p407 = pneg %p111
        %p408 = pneg %p108
        %p409 = pneg %p132
        %p410 = pneg %p129
        %p411 = pneg %p153
        %p412 = pneg %p150
        %p413 = pneg %p174
        %p414 = pneg %p171
        %p415 = pneg %p195
        %p416 = pneg %p192
        %p417 = pneg %p216
        %p418 = pneg %p213
        %p419 = pneg %p237
        %p420 = pneg %p234
        %p421 = pneg %p258
        %p422 = pneg %p255
        %p423 = pneg %p279
        %p424 = pneg %p276
        %p425 = pneg %p300
        %p426 = pneg %p297
        %p427 = pneg %p326
        %p428 = pneg %p323
        %s429 = sand.u32 %s313, 1
        %s430 = scalar_lea.sflag [#allocation3], %s429
        %s431 = sand.u32 %s313, 1
        %s432 = smul.addr %s431, 16
        %s433 = scalar_lea.vmem [#allocation2], %s432
        %p434 = scmp.lt.s32.totalorder %s27, 1
        %s435 = scalar_select %p434, %s27, 1
        %s436 = smul.addr %s435, 2
        %s437 = smul.addr %s436, 4
        %s438 = scalar_lea.vmem %s0, %s437
        %v439 = vld [vmem:[%s438] sm:$0xff]
        %v440 = vld [vmem:[%s1] sm:$0xff]
        %v441 = vld [vmem:[%s2] sm:$0xff]
        %443 = vset.pattern.permute.xlu0 0
        %444 = vperm.xlu0 %443, %v441
        %v445 = vpop.permute.xlu0 %444
        %448 = vst [vmem:[#allocation1] ss:$2 sm:$0xff] %v439
        %v449 = vld.sshfl [vmem:[#allocation1] sm:$0xff pattern:$0x75316420]
        %v450 = vld.sshfl [vmem:[#allocation1 + $0x8] sm:$0xff pattern:$0x75316420]
        %vm451 = vcmask 31744
        %v453 = vsel %vm451, %v440, 0
        %vm455 = vcmask 1043456
        %v456 = vsel %vm455, %v449, 0
        %v458 = vsel %vm455, %v450, 0
        %460 = vmatpush.msra.mxu0 0.0
        %461 = vmatpush.msra.mxu0 0.0
        %462 = vmatpush.msra.mxu0 0.0
        %463 = vmatpush.msra.mxu0 0.0
        %464 = vmatpush.msra.mxu0 0.0
        %465 = vmatpush.msra.mxu0 0.0
        %466 = vmatpush.msra.mxu0 0.0
        %467 = vmatpush.msra.mxu0 0.0
        %468 = vmatpush.msra.mxu0 0.0
        %469 = vmatpush.msra.mxu0 0.0
        %470 = vmatpush.msra.mxu0 0.0
        %471 = vmatpush.msra.mxu0 0.0
        %472 = vmatpush.msra.mxu0 0.0
        %473 = vmatpush.msra.mxu0 0.0
        %474 = vmatpush.msra.mxu0 0.0
        %475 = vmatpush.msra.mxu0 %v456
        %476 = vmatmul.f32.gmra.mxu0 %v453
        %v477 = vpop.f32.mrf.mxu0
        %v478 = vadd.f32 %v445, %v477
        %479 = vdwg.mxu0
        %480 = vmatpush.msra.mxu0 0.0
        %481 = vmatpush.msra.mxu0 0.0
        %482 = vmatpush.msra.mxu0 0.0
        %483 = vmatpush.msra.mxu0 0.0
        %484 = vmatpush.msra.mxu0 0.0
        %485 = vmatpush.msra.mxu0 0.0
        %486 = vmatpush.msra.mxu0 0.0
        %487 = vmatpush.msra.mxu0 0.0
        %488 = vmatpush.msra.mxu0 0.0
        %489 = vmatpush.msra.mxu0 0.0
        %490 = vmatpush.msra.mxu0 0.0
        %491 = vmatpush.msra.mxu0 0.0
        %492 = vmatpush.msra.mxu0 0.0
        %493 = vmatpush.msra.mxu0 0.0
        %494 = vmatpush.msra.mxu0 0.0
        %495 = vmatpush.msra.mxu0 %v458
        %496 = vmatmul.f32.gmra.mxu0 %v453
        %v497 = vpop.f32.mrf.mxu0
        %v498 = vadd.f32 %v445, %v497
        %499 = vdwg.mxu0
        %v500 = vxor.u32 %v478, 2147483648
        %v501 = vxor.u32 %v498, 2147483648
        %v502 = vmul.f32 %v500, 1.442695
        %v503 = vpow.pop %v502
        %v504 = vmul.f32 %v501, 1.442695
        %v505 = vpow.pop %v504
        %v506 = vadd.f32 %v503, 1.0
        %v507 = vadd.f32 %v505, 1.0
        %v508 = vrcp.pop %v506
        %v509 = vmul.f32 %v506, %v508
        %v510 = vsub.f32 1.0, %v509
        %v511 = vmul.f32 %v508, %v510
        %v512 = vadd.f32 %v508, %v511
        %vm513 = vweird.f32 %v506
        %vm514 = vweird.f32 %v508
        %vm515 = vmor %vm513, %vm514
        %v516 = vsel %vm515, %v508, %v512
        %v517 = vand.u32 2147483647, %v506
        %vm518 = vcmp.eq.f32.partialorder %v517, 8.507059e+37
        %v519 = vand.u32 %v506, 2147483648
        %v520 = vor.u32 1.1754944e-38, %v519
        %v521 = vsel %vm518, %v520, %v516
        %v522 = vmul.f32 1.0, %v521
        %v523 = vrcp.pop %v507
        %v524 = vmul.f32 %v507, %v523
        %v525 = vsub.f32 1.0, %v524
        %v526 = vmul.f32 %v523, %v525
        %v527 = vadd.f32 %v523, %v526
        %vm528 = vweird.f32 %v507
        %vm529 = vweird.f32 %v523
        %vm530 = vmor %vm528, %vm529
        %v531 = vsel %vm530, %v523, %v527
        %v532 = vand.u32 2147483647, %v507
        %vm533 = vcmp.eq.f32.partialorder %v532, 8.507059e+37
        %v534 = vand.u32 %v507, 2147483648
        %v535 = vor.u32 1.1754944e-38, %v534
        %v536 = vsel %vm533, %v535, %v531
        %v537 = vmul.f32 1.0, %v536
        %v538 = vrot.slane %v439, 4
        %540 = vrot.lane.b32.xlu0 %v439, 112
        %v541 = vpop.permute.xlu0 %540
        %v542 = vrot.slane %v541, 4
        %544 = vrot.lane.b32.xlu0 %v439, 96
        %v545 = vpop.permute.xlu0 %544
        %v546 = vrot.slane %v545, 4
        %548 = vrot.lane.b32.xlu0 %v439, 80
        %v549 = vpop.permute.xlu0 %548
        %v550 = vrot.slane %v549, 4
        %552 = vrot.lane.b32.xlu0 %v439, 64
        %v553 = vpop.permute.xlu0 %552
        %v554 = vrot.slane %v553, 4
        %556 = vrot.lane.b32.xlu0 %v439, 48
        %v557 = vpop.permute.xlu0 %556
        %v558 = vrot.slane %v557, 4
        %560 = vrot.lane.b32.xlu0 %v439, 32
        %v561 = vpop.permute.xlu0 %560
        %v562 = vrot.slane %v561, 4
        %564 = vrot.lane.b32.xlu0 %v439, 16
        %v565 = vpop.permute.xlu0 %564
        %v566 = vrot.slane %v565, 4
        %v575 = vrot.slane %v545, 4
        %vm576 = vcmask 1047556
        %v577 = vsel %vm576, %v575, %v439
        %v579 = vunpack.c.l.s4 1983009808
        %v580 = vunpack.c.0.s8 %v579
        %v581 = vperm.slane %v577, %v580
        %v582 = vrot.slane %v549, 4
        %v583 = vsel %vm576, %v582, %v541
        %v585 = vunpack.c.l.s4 1983009808
        %v586 = vunpack.c.0.s8 %v585
        %v587 = vperm.slane %v583, %v586
        %v588 = vrot.slane %v587, 4
        %v589 = vsel %vm576, %v588, %v581
        %v590 = vrot.slane %v581, 4
        %v591 = vsel %vm576, %v587, %v590
        %v593 = vunpack.c.l.s4 1934713408
        %v594 = vunpack.c.0.s8 %v593
        %v595 = vperm.slane %v589, %v594
        %v597 = vunpack.c.l.s4 1934713408
        %v598 = vunpack.c.0.s8 %v597
        %v599 = vperm.slane %v591, %v598
        %v600 = vrot.slane %v595, 4
        %v601 = vsel %vm576, 0.0, %v600
        %v602 = vrot.slane %v599, 4
        %v603 = vsel %vm576, 0.0, %v602
        %v604 = vrot.slane %v561, 4
        %v605 = vsel %vm576, %v604, %v553
        %v607 = vunpack.c.l.s4 1983009808
        %v608 = vunpack.c.0.s8 %v607
        %v609 = vperm.slane %v605, %v608
        %v610 = vrot.slane %v565, 4
        %v611 = vsel %vm576, %v610, %v557
        %v613 = vunpack.c.l.s4 1983009808
        %v614 = vunpack.c.0.s8 %v613
        %v615 = vperm.slane %v611, %v614
        %v616 = vrot.slane %v615, 4
        %v617 = vsel %vm576, %v616, %v609
        %v618 = vrot.slane %v609, 4
        %v619 = vsel %vm576, %v615, %v618
        %v621 = vunpack.c.l.s4 1934713408
        %v622 = vunpack.c.0.s8 %v621
        %v623 = vperm.slane %v617, %v622
        %v625 = vunpack.c.l.s4 1934713408
        %v626 = vunpack.c.0.s8 %v625
        %v627 = vperm.slane %v619, %v626
        %v628 = vrot.slane %v623, 4
        %v629 = vsel %vm576, 0.0, %v628
        %v630 = vrot.slane %v627, 4
        %v631 = vsel %vm576, 0.0, %v630
        %v632 = vrot.slane %v546, 4
        %v633 = vsel %vm576, %v632, %v538
        %v635 = vunpack.c.l.s4 1983009808
        %v636 = vunpack.c.0.s8 %v635
        %v637 = vperm.slane %v633, %v636
        %v638 = vrot.slane %v550, 4
        %v639 = vsel %vm576, %v638, %v542
        %v641 = vunpack.c.l.s4 1983009808
        %v642 = vunpack.c.0.s8 %v641
        %v643 = vperm.slane %v639, %v642
        %v644 = vrot.slane %v643, 4
        %v645 = vsel %vm576, %v644, %v637
        %v646 = vrot.slane %v637, 4
        %v647 = vsel %vm576, %v643, %v646
        %v649 = vunpack.c.l.s4 1934713408
        %v650 = vunpack.c.0.s8 %v649
        %v651 = vperm.slane %v645, %v650
        %v653 = vunpack.c.l.s4 1934713408
        %v654 = vunpack.c.0.s8 %v653
        %v655 = vperm.slane %v647, %v654
        %v656 = vrot.slane %v651, 4
        %v657 = vsel %vm576, 0.0, %v656
        %v658 = vrot.slane %v655, 4
        %v659 = vsel %vm576, 0.0, %v658
        %v660 = vrot.slane %v562, 4
        %v661 = vsel %vm576, %v660, %v554
        %v663 = vunpack.c.l.s4 1983009808
        %v664 = vunpack.c.0.s8 %v663
        %v665 = vperm.slane %v661, %v664
        %v666 = vrot.slane %v566, 4
        %v667 = vsel %vm576, %v666, %v558
        %v669 = vunpack.c.l.s4 1983009808
        %v670 = vunpack.c.0.s8 %v669
        %v671 = vperm.slane %v667, %v670
        %v672 = vrot.slane %v671, 4
        %v673 = vsel %vm576, %v672, %v665
        %v674 = vrot.slane %v665, 4
        %v675 = vsel %vm576, %v671, %v674
        %v677 = vunpack.c.l.s4 1934713408
        %v678 = vunpack.c.0.s8 %v677
        %v679 = vperm.slane %v673, %v678
        %v681 = vunpack.c.l.s4 1934713408
        %v682 = vunpack.c.0.s8 %v681
        %v683 = vperm.slane %v675, %v682
        %v684 = vrot.slane %v679, 4
        %v685 = vsel %vm576, 0.0, %v684
        %v686 = vrot.slane %v683, 4
        %v687 = vsel %vm576, 0.0, %v686
        %704 = vst [vmem:[#allocation1] ss:$2 sm:$0xff] %v595
        %s705 = scalar_lea.vmem [#allocation1], 1
        %706 = vst [vmem:[%s705] ss:$2 sm:$0xff] %v623
        %s707 = scalar_lea.vmem [#allocation1], 16
        %708 = vst [vmem:[%s707] ss:$2 sm:$0xff] %v651
        %s709 = scalar_lea.vmem [#allocation1], 17
        %710 = vst [vmem:[%s709] ss:$2 sm:$0xff] %v679
        %v711 = vld.sshfl [vmem:[#allocation1] sm:$0xff pattern:$0x75316420]
        %v712 = vld.sshfl [vmem:[#allocation1 + $0x10] sm:$0xff pattern:$0x75316420]
        %s713 = scalar_lea.vmem [#allocation1], 32
        %714 = vst [vmem:[%s713] ss:$2 sm:$0xff] %v601
        %s715 = scalar_lea.vmem [#allocation1], 33
        %716 = vst [vmem:[%s715] ss:$2 sm:$0xff] %v629
        %s717 = scalar_lea.vmem [#allocation1], 48
        %718 = vst [vmem:[%s717] ss:$2 sm:$0xff] %v657
        %s719 = scalar_lea.vmem [#allocation1], 49
        %720 = vst [vmem:[%s719] ss:$2 sm:$0xff] %v685
        %v721 = vld.sshfl [vmem:[#allocation1 + $0x20] sm:$0xff pattern:$0x75316420]
        %v722 = vld.sshfl [vmem:[#allocation1 + $0x30] sm:$0xff pattern:$0x75316420]
        %723 = vst [vmem:[#allocation1] ss:$2 sm:$0xff] %v599
        %724 = vst [vmem:[%s705] ss:$2 sm:$0xff] %v627
        %725 = vst [vmem:[%s707] ss:$2 sm:$0xff] %v655
        %726 = vst [vmem:[%s709] ss:$2 sm:$0xff] %v683
        %v727 = vld.sshfl [vmem:[#allocation1] sm:$0xff pattern:$0x75316420]
        %v728 = vld.sshfl [vmem:[#allocation1 + $0x10] sm:$0xff pattern:$0x75316420]
        %729 = vst [vmem:[%s713] ss:$2 sm:$0xff] %v603
        %730 = vst [vmem:[%s715] ss:$2 sm:$0xff] %v631
        %731 = vst [vmem:[%s717] ss:$2 sm:$0xff] %v659
        %732 = vst [vmem:[%s719] ss:$2 sm:$0xff] %v687
        %v733 = vld.sshfl [vmem:[#allocation1 + $0x20] sm:$0xff pattern:$0x75316420]
        %v734 = vld.sshfl [vmem:[#allocation1 + $0x30] sm:$0xff pattern:$0x75316420]
        %vm743 = vcmask 130048
        %v744 = vsel %vm743, %v711, 0.0
        %745 = vadd.xlane.f32.xlu0 %v744
        %v746 = vpop.xlane.xlu0 %745
        %v747 = vsel %vm743, %v712, 0.0
        %748 = vadd.xlane.f32.xlu0 %v747
        %v749 = vpop.xlane.xlu0 %748
        %v750 = vsel %vm743, %v721, 0.0
        %751 = vadd.xlane.f32.xlu0 %v750
        %v752 = vpop.xlane.xlu0 %751
        %v753 = vsel %vm743, %v722, 0.0
        %754 = vadd.xlane.f32.xlu0 %v753
        %v755 = vpop.xlane.xlu0 %754
        %v756 = vsel %vm743, %v727, 0.0
        %757 = vadd.xlane.f32.xlu0 %v756
        %v758 = vpop.xlane.xlu0 %757
        %v759 = vsel %vm743, %v728, 0.0
        %760 = vadd.xlane.f32.xlu0 %v759
        %v761 = vpop.xlane.xlu0 %760
        %v762 = vsel %vm743, %v733, 0.0
        %763 = vadd.xlane.f32.xlu0 %v762
        %v764 = vpop.xlane.xlu0 %763
        %v765 = vsel %vm743, %v734, 0.0
        %766 = vadd.xlane.f32.xlu0 %v765
        %v767 = vpop.xlane.xlu0 %766
        %v768 = vrcp.pop 16.0
        %v769 = vmul.f32 16.0, %v768
        %v770 = vsub.f32 1.0, %v769
        %v771 = vmul.f32 %v768, %v770
        %v772 = vadd.f32 %v768, %v771
        %vm773 = vweird.f32 %v768
        %v774 = vsel %vm773, %v768, %v772
        %v775 = vmul.f32 %v746, %v774
        %v776 = vmul.f32 %v749, %v774
        %v777 = vmul.f32 %v752, %v774
        %v778 = vmul.f32 %v755, %v774
        %v779 = vmul.f32 %v758, %v774
        %v780 = vmul.f32 %v761, %v774
        %v781 = vmul.f32 %v764, %v774
        %v782 = vmul.f32 %v767, %v774
        %783 = vst [vmem:[#allocation1] ss:$2 sm:$0xff] %v595
        %s784 = scalar_lea.vmem [#allocation1], 1
        %785 = vst [vmem:[%s784] ss:$2 sm:$0xff] %v623
        %s786 = scalar_lea.vmem [#allocation1], 16
        %787 = vst [vmem:[%s786] ss:$2 sm:$0xff] %v651
        %s788 = scalar_lea.vmem [#allocation1], 17
        %789 = vst [vmem:[%s788] ss:$2 sm:$0xff] %v679
        %v790 = vld.sshfl [vmem:[#allocation1] sm:$0xff pattern:$0x75316420]
        %v791 = vld.sshfl [vmem:[#allocation1 + $0x10] sm:$0xff pattern:$0x75316420]
        %s792 = scalar_lea.vmem [#allocation1], 32
        %793 = vst [vmem:[%s792] ss:$2 sm:$0xff] %v601
        %s794 = scalar_lea.vmem [#allocation1], 33
        %795 = vst [vmem:[%s794] ss:$2 sm:$0xff] %v629
        %s796 = scalar_lea.vmem [#allocation1], 48
        %797 = vst [vmem:[%s796] ss:$2 sm:$0xff] %v657
        %s798 = scalar_lea.vmem [#allocation1], 49
        %799 = vst [vmem:[%s798] ss:$2 sm:$0xff] %v685
        %v800 = vld.sshfl [vmem:[#allocation1 + $0x20] sm:$0xff pattern:$0x75316420]
        %v801 = vld.sshfl [vmem:[#allocation1 + $0x30] sm:$0xff pattern:$0x75316420]
        %802 = vst [vmem:[#allocation1] ss:$2 sm:$0xff] %v599
        %803 = vst [vmem:[%s784] ss:$2 sm:$0xff] %v627
        %804 = vst [vmem:[%s786] ss:$2 sm:$0xff] %v655
        %805 = vst [vmem:[%s788] ss:$2 sm:$0xff] %v683
        %v806 = vld.sshfl [vmem:[#allocation1] sm:$0xff pattern:$0x75316420]
        %v807 = vld.sshfl [vmem:[#allocation1 + $0x10] sm:$0xff pattern:$0x75316420]
        %808 = vst [vmem:[%s792] ss:$2 sm:$0xff] %v603
        %809 = vst [vmem:[%s794] ss:$2 sm:$0xff] %v631
        %810 = vst [vmem:[%s796] ss:$2 sm:$0xff] %v659
        %811 = vst [vmem:[%s798] ss:$2 sm:$0xff] %v687
        %v812 = vld.sshfl [vmem:[#allocation1 + $0x20] sm:$0xff pattern:$0x75316420]
        %v813 = vld.sshfl [vmem:[#allocation1 + $0x30] sm:$0xff pattern:$0x75316420]
        %v822 = vsel %vm743, %v790, 0.0
        %v823 = vsel %vm743, %v791, 0.0
        %v824 = vadd.f32 %v822, %v823
        %v825 = vrot.slane %v824, 4
        %v826 = vadd.f32 %v824, %v825
        %v827 = vrot.slane %v826, 2
        %v828 = vadd.f32 %v826, %v827
        %v829 = vrot.slane %v828, 1
        %v830 = vadd.f32 %v828, %v829
        %v831 = vsel %vm743, %v800, 0.0
        %v832 = vsel %vm743, %v801, 0.0
        %v833 = vadd.f32 %v831, %v832
        %v834 = vrot.slane %v833, 4
        %v835 = vadd.f32 %v833, %v834
        %v836 = vrot.slane %v835, 2
        %v837 = vadd.f32 %v835, %v836
        %v838 = vrot.slane %v837, 1
        %v839 = vadd.f32 %v837, %v838
        %v840 = vsel %vm743, %v806, 0.0
        %v841 = vsel %vm743, %v807, 0.0
        %v842 = vadd.f32 %v840, %v841
        %v843 = vrot.slane %v842, 4
        %v844 = vadd.f32 %v842, %v843
        %v845 = vrot.slane %v844, 2
        %v846 = vadd.f32 %v844, %v845
        %v847 = vrot.slane %v846, 1
        %v848 = vadd.f32 %v846, %v847
        %v849 = vsel %vm743, %v812, 0.0
        %v850 = vsel %vm743, %v813, 0.0
        %v851 = vadd.f32 %v849, %v850
        %v852 = vrot.slane %v851, 4
        %v853 = vadd.f32 %v851, %v852
        %v854 = vrot.slane %v853, 2
        %v855 = vadd.f32 %v853, %v854
        %v856 = vrot.slane %v855, 1
        %v857 = vadd.f32 %v855, %v856
        %v858 = vmul.f32 %v830, %v774
        %v859 = vmul.f32 %v839, %v774
        %v860 = vmul.f32 %v848, %v774
        %v861 = vmul.f32 %v857, %v774
        %v862 = vld [vmem:[%s3] sm:$0xf]
        %v863 = vld [vmem:[%s4] sm:$0xf]
        %865 = vset.pattern.permute.xlu0 0
        %866 = vperm.xlu0 %865, %v863
        %v867 = vpop.permute.xlu0 %866
        %v877 = vlaneseq
        %v878 = vand.u32 %v877, 127
        %v879 = vperm.slane %v775, %v878
        %v880 = vadd.s32 %v878, 4294967288
        %v881 = vperm.slane %v776, %v880
        %vm882 = vcmask 130112
        %v883 = vsel %vm882, %v881, %v879
        %v884 = vperm.slane %v777, %v878
        %v885 = vperm.slane %v778, %v880
        %v886 = vsel %vm882, %v885, %v884
        %v887 = vperm.slane %v779, %v878
        %v888 = vperm.slane %v780, %v880
        %v889 = vsel %vm882, %v888, %v887
        %v890 = vperm.slane %v781, %v878
        %v891 = vperm.slane %v782, %v880
        %v892 = vsel %vm882, %v891, %v890
        %vm893 = vcmask 1041409
        %v894 = vsel %vm893, %v886, %v883
        %vm895 = vcmask 1042434
        %v896 = vsel %vm895, %v889, %v894
        %vm897 = vcmask 1043459
        %v898 = vsel %vm897, %v892, %v896
        %v900 = vsel %vm451, %v862, 0
        %v902 = vsel %vm455, %v898, 0
        %904 = vmatpush.msra.mxu0 0.0
        %905 = vmatpush.msra.mxu0 0.0
        %906 = vmatpush.msra.mxu0 0.0
        %907 = vmatpush.msra.mxu0 0.0
        %908 = vmatpush.msra.mxu0 0.0
        %909 = vmatpush.msra.mxu0 0.0
        %910 = vmatpush.msra.mxu0 0.0
        %911 = vmatpush.msra.mxu0 0.0
        %912 = vmatpush.msra.mxu0 0.0
        %913 = vmatpush.msra.mxu0 0.0
        %914 = vmatpush.msra.mxu0 0.0
        %915 = vmatpush.msra.mxu0 0.0
        %916 = vmatpush.msra.mxu0 0.0
        %917 = vmatpush.msra.mxu0 0.0
        %918 = vmatpush.msra.mxu0 0.0
        %919 = vmatpush.msra.mxu0 %v902
        %920 = vmatmul.f32.gmra.mxu0 %v900
        %v921 = vpop.f32.mrf.mxu0
        %v922 = vadd.f32 %v867, %v921
        %923 = vdwg.mxu0
        %v924 = vld [vmem:[%s5] sm:$0xf]
        %926 = vset.pattern.permute.xlu0 0
        %927 = vperm.xlu0 %926, %v924
        %v928 = vpop.permute.xlu0 %927
        %v930 = vmul.f32 %v922, %v928
        %v931 = vld [vmem:[%s6] sm:$0xf]
        %933 = vset.pattern.permute.xlu0 0
        %934 = vperm.xlu0 %933, %v931
        %v935 = vpop.permute.xlu0 %934
        %v937 = vadd.f32 %v930, %v935
        %v938 = vadd.f32 %v937, 3.0
        %v939 = vmax.f32 %v938, 0.0
        %v940 = vmin.f32 %v939, 6.0
        %v941 = vmul.f32 %v940, 0.16666667
        %v942 = vmul.f32 %v937, %v941
        %v947 = vsel %vm893, %v859, %v858
        %v948 = vsel %vm895, %v860, %v947
        %v949 = vsel %vm897, %v861, %v948
        %v950 = vsel %vm455, %v949, 0
        %952 = vmatpush.msra.mxu0 0.0
        %953 = vmatpush.msra.mxu0 0.0
        %954 = vmatpush.msra.mxu0 0.0
        %955 = vmatpush.msra.mxu0 0.0
        %956 = vmatpush.msra.mxu0 0.0
        %957 = vmatpush.msra.mxu0 0.0
        %958 = vmatpush.msra.mxu0 0.0
        %959 = vmatpush.msra.mxu0 0.0
        %960 = vmatpush.msra.mxu0 0.0
        %961 = vmatpush.msra.mxu0 0.0
        %962 = vmatpush.msra.mxu0 0.0
        %963 = vmatpush.msra.mxu0 0.0
        %964 = vmatpush.msra.mxu0 0.0
        %965 = vmatpush.msra.mxu0 0.0
        %966 = vmatpush.msra.mxu0 0.0
        %967 = vmatpush.msra.mxu0 %v950
        %968 = vmatmul.f32.gmra.mxu0 %v900
        %v969 = vpop.f32.mrf.mxu0
        %v970 = vadd.f32 %v867, %v969
        %971 = vdwg.mxu0
        %v972 = vmul.f32 %v970, %v928
        %v973 = vadd.f32 %v972, %v935
        %v974 = vadd.f32 %v973, 3.0
        %v975 = vmax.f32 %v974, 0.0
        %v976 = vmin.f32 %v975, 6.0
        %v977 = vmul.f32 %v976, 0.16666667
        %v978 = vmul.f32 %v973, %v977
        %v979 = vld [vmem:[%s7] sm:$0xff]
        %v980 = vld [vmem:[%s8] sm:$0xff]
        %982 = vset.pattern.permute.xlu0 0
        %983 = vperm.xlu0 %982, %v980
        %v984 = vpop.permute.xlu0 %983
        %v987 = vsel %vm451, %v979, 0
        %v990 = vsel %vm455, %v942, 0
        %992 = vmatpush.msra.mxu0 0.0
        %993 = vmatpush.msra.mxu0 0.0
        %994 = vmatpush.msra.mxu0 0.0
        %995 = vmatpush.msra.mxu0 0.0
        %996 = vmatpush.msra.mxu0 0.0
        %997 = vmatpush.msra.mxu0 0.0
        %998 = vmatpush.msra.mxu0 0.0
        %999 = vmatpush.msra.mxu0 0.0
        %1000 = vmatpush.msra.mxu0 0.0
        %1001 = vmatpush.msra.mxu0 0.0
        %1002 = vmatpush.msra.mxu0 0.0
        %1003 = vmatpush.msra.mxu0 0.0
        %1004 = vmatpush.msra.mxu0 0.0
        %1005 = vmatpush.msra.mxu0 0.0
        %1006 = vmatpush.msra.mxu0 0.0
        %1007 = vmatpush.msra.mxu0 %v990
        %1008 = vmatmul.f32.gmra.mxu0 %v987
        %v1009 = vpop.f32.mrf.mxu0
        %v1010 = vadd.f32 %v984, %v1009
        %1011 = vdwg.mxu0
        %v1012 = vxor.u32 %v1010, 2147483648
        %v1013 = vmul.f32 %v1012, 1.442695
        %v1014 = vpow.pop %v1013
        %v1015 = vadd.f32 %v1014, 1.0
        %v1016 = vrcp.pop %v1015
        %v1017 = vmul.f32 %v1015, %v1016
        %v1018 = vsub.f32 1.0, %v1017
        %v1019 = vmul.f32 %v1016, %v1018
        %v1020 = vadd.f32 %v1016, %v1019
        %vm1021 = vweird.f32 %v1015
        %vm1022 = vweird.f32 %v1016
        %vm1023 = vmor %vm1021, %vm1022
        %v1024 = vsel %vm1023, %v1016, %v1020
        %v1025 = vand.u32 2147483647, %v1015
        %vm1026 = vcmp.eq.f32.partialorder %v1025, 8.507059e+37
        %v1027 = vand.u32 %v1015, 2147483648
        %v1028 = vor.u32 1.1754944e-38, %v1027
        %v1029 = vsel %vm1026, %v1028, %v1024
        %v1030 = vmul.f32 1.0, %v1029
        %v1031 = vld [vmem:[%s9] sm:$0xff]
        %v1032 = vld [vmem:[%s10] sm:$0xff]
        %1034 = vset.pattern.permute.xlu0 0
        %1035 = vperm.xlu0 %1034, %v1032
        %v1036 = vpop.permute.xlu0 %1035
        %v1039 = vsel %vm451, %v1031, 0
        %v1042 = vsel %vm455, %v978, 0
        %1044 = vmatpush.msra.mxu0 0.0
        %1045 = vmatpush.msra.mxu0 0.0
        %1046 = vmatpush.msra.mxu0 0.0
        %1047 = vmatpush.msra.mxu0 0.0
        %1048 = vmatpush.msra.mxu0 0.0
        %1049 = vmatpush.msra.mxu0 0.0
        %1050 = vmatpush.msra.mxu0 0.0
        %1051 = vmatpush.msra.mxu0 0.0
        %1052 = vmatpush.msra.mxu0 0.0
        %1053 = vmatpush.msra.mxu0 0.0
        %1054 = vmatpush.msra.mxu0 0.0
        %1055 = vmatpush.msra.mxu0 0.0
        %1056 = vmatpush.msra.mxu0 0.0
        %1057 = vmatpush.msra.mxu0 0.0
        %1058 = vmatpush.msra.mxu0 0.0
        %1059 = vmatpush.msra.mxu0 %v1042
        %1060 = vmatmul.f32.gmra.mxu0 %v1039
        %v1061 = vpop.f32.mrf.mxu0
        %v1062 = vadd.f32 %v1036, %v1061
        %1063 = vdwg.mxu0
        %v1064 = vxor.u32 %v1062, 2147483648
        %v1065 = vmul.f32 %v1064, 1.442695
        %v1066 = vpow.pop %v1065
        %v1067 = vadd.f32 %v1066, 1.0
        %v1068 = vrcp.pop %v1067
        %v1069 = vmul.f32 %v1067, %v1068
        %v1070 = vsub.f32 1.0, %v1069
        %v1071 = vmul.f32 %v1068, %v1070
        %v1072 = vadd.f32 %v1068, %v1071
        %vm1073 = vweird.f32 %v1067
        %vm1074 = vweird.f32 %v1068
        %vm1075 = vmor %vm1073, %vm1074
        %v1076 = vsel %vm1075, %v1068, %v1072
        %v1077 = vand.u32 2147483647, %v1067
        %vm1078 = vcmp.eq.f32.partialorder %v1077, 8.507059e+37
        %v1079 = vand.u32 %v1067, 2147483648
        %v1080 = vor.u32 1.1754944e-38, %v1079
        %v1081 = vsel %vm1078, %v1080, %v1076
        %v1082 = vmul.f32 1.0, %v1081
        %v1083 = vperm.slane %v1030, 0
        %v1084 = vlaneseq
        %v1085 = vshrl.u32 %v1084, 7
        %1087 = vset.pattern.permute.xlu0 %v1085
        %1088 = vperm.xlu0 %1087, %v1083
        %v1089 = vpop.permute.xlu0 %1088
        %v1090 = vlaneseq
        %v1091 = vshrl.u32 %v1090, 7
        %v1092 = vadd.s32 %v1091, 8
        %1093 = vset.pattern.permute.xlu0 %v1092
        %1094 = vperm.xlu0 %1093, %v1083
        %v1095 = vpop.permute.xlu0 %1094
        %v1096 = vperm.slane %v1030, 1
        %v1097 = vlaneseq
        %v1098 = vshrl.u32 %v1097, 7
        %1100 = vset.pattern.permute.xlu0 %v1098
        %1101 = vperm.xlu0 %1100, %v1096
        %v1102 = vpop.permute.xlu0 %1101
        %v1103 = vlaneseq
        %v1104 = vshrl.u32 %v1103, 7
        %v1105 = vadd.s32 %v1104, 8
        %1106 = vset.pattern.permute.xlu0 %v1105
        %1107 = vperm.xlu0 %1106, %v1096
        %v1108 = vpop.permute.xlu0 %1107
        %v1109 = vperm.slane %v1030, 2
        %v1110 = vlaneseq
        %v1111 = vshrl.u32 %v1110, 7
        %1113 = vset.pattern.permute.xlu0 %v1111
        %1114 = vperm.xlu0 %1113, %v1109
        %v1115 = vpop.permute.xlu0 %1114
        %v1116 = vlaneseq
        %v1117 = vshrl.u32 %v1116, 7
        %v1118 = vadd.s32 %v1117, 8
        %1119 = vset.pattern.permute.xlu0 %v1118
        %1120 = vperm.xlu0 %1119, %v1109
        %v1121 = vpop.permute.xlu0 %1120
        %v1122 = vperm.slane %v1030, 3
        %v1123 = vlaneseq
        %v1124 = vshrl.u32 %v1123, 7
        %1126 = vset.pattern.permute.xlu0 %v1124
        %1127 = vperm.xlu0 %1126, %v1122
        %v1128 = vpop.permute.xlu0 %1127
        %v1129 = vlaneseq
        %v1130 = vshrl.u32 %v1129, 7
        %v1131 = vadd.s32 %v1130, 8
        %1132 = vset.pattern.permute.xlu0 %v1131
        %1133 = vperm.xlu0 %1132, %v1122
        %v1134 = vpop.permute.xlu0 %1133
        %v1135 = vperm.slane %v1030, 4
        %v1136 = vlaneseq
        %v1137 = vshrl.u32 %v1136, 7
        %1139 = vset.pattern.permute.xlu0 %v1137
        %1140 = vperm.xlu0 %1139, %v1135
        %v1141 = vpop.permute.xlu0 %1140
        %v1142 = vlaneseq
        %v1143 = vshrl.u32 %v1142, 7
        %v1144 = vadd.s32 %v1143, 8
        %1145 = vset.pattern.permute.xlu0 %v1144
        %1146 = vperm.xlu0 %1145, %v1135
        %v1147 = vpop.permute.xlu0 %1146
        %v1148 = vperm.slane %v1030, 5
        %v1149 = vlaneseq
        %v1150 = vshrl.u32 %v1149, 7
        %1152 = vset.pattern.permute.xlu0 %v1150
        %1153 = vperm.xlu0 %1152, %v1148
        %v1154 = vpop.permute.xlu0 %1153
        %v1155 = vlaneseq
        %v1156 = vshrl.u32 %v1155, 7
        %v1157 = vadd.s32 %v1156, 8
        %1158 = vset.pattern.permute.xlu0 %v1157
        %1159 = vperm.xlu0 %1158, %v1148
        %v1160 = vpop.permute.xlu0 %1159
        %v1161 = vperm.slane %v1030, 6
        %v1162 = vlaneseq
        %v1163 = vshrl.u32 %v1162, 7
        %1165 = vset.pattern.permute.xlu0 %v1163
        %1166 = vperm.xlu0 %1165, %v1161
        %v1167 = vpop.permute.xlu0 %1166
        %v1168 = vlaneseq
        %v1169 = vshrl.u32 %v1168, 7
        %v1170 = vadd.s32 %v1169, 8
        %1171 = vset.pattern.permute.xlu0 %v1170
        %1172 = vperm.xlu0 %1171, %v1161
        %v1173 = vpop.permute.xlu0 %1172
        %v1174 = vperm.slane %v1030, 7
        %v1175 = vlaneseq
        %v1176 = vshrl.u32 %v1175, 7
        %1178 = vset.pattern.permute.xlu0 %v1176
        %1179 = vperm.xlu0 %1178, %v1174
        %v1180 = vpop.permute.xlu0 %1179
        %v1181 = vlaneseq
        %v1182 = vshrl.u32 %v1181, 7
        %v1183 = vadd.s32 %v1182, 8
        %1184 = vset.pattern.permute.xlu0 %v1183
        %1185 = vperm.xlu0 %1184, %v1174
        %v1186 = vpop.permute.xlu0 %1185
        %v1188 = vrot.slane %v1082, 1
        %v1189 = vrot.slane %v1082, 2
        %v1190 = vrot.slane %v1082, 3
        %v1191 = vrot.slane %v1082, 4
        %v1192 = vrot.slane %v1082, 5
        %v1193 = vrot.slane %v1082, 6
        %v1194 = vrot.slane %v1082, 7
        %v1195 = vperm.slane %v1082, 0
        %v1196 = vperm.slane %v1188, 0
        %v1197 = vperm.slane %v1189, 0
        %v1198 = vperm.slane %v1190, 0
        %v1199 = vperm.slane %v1191, 0
        %v1200 = vperm.slane %v1192, 0
        %v1201 = vperm.slane %v1193, 0
        %v1202 = vperm.slane %v1194, 0
        %v1211 = vmul.f32 %v1089, %v1195
        %v1212 = vmul.f32 %v1095, %v1195
        %v1213 = vmul.f32 %v1102, %v1196
        %v1214 = vmul.f32 %v1108, %v1196
        %v1215 = vmul.f32 %v1115, %v1197
        %v1216 = vmul.f32 %v1121, %v1197
        %v1217 = vmul.f32 %v1128, %v1198
        %v1218 = vmul.f32 %v1134, %v1198
        %v1219 = vmul.f32 %v1141, %v1199
        %v1220 = vmul.f32 %v1147, %v1199
        %v1221 = vmul.f32 %v1154, %v1200
        %v1222 = vmul.f32 %v1160, %v1200
        %v1223 = vmul.f32 %v1167, %v1201
        %v1224 = vmul.f32 %v1173, %v1201
        %v1225 = vmul.f32 %v1180, %v1202
        %v1226 = vmul.f32 %v1186, %v1202
        %v1227 = vrot.slane %v1215, 4
        %v1228 = vsel %vm576, %v1227, %v1211
        %v1229 = vrot.slane %v1211, 4
        %v1230 = vsel %vm576, %v1215, %v1229
        %v1232 = vunpack.c.l.s4 1983009808
        %v1233 = vunpack.c.0.s8 %v1232
        %v1234 = vperm.slane %v1228, %v1233
        %v1236 = vunpack.c.l.s4 1983009808
        %v1237 = vunpack.c.0.s8 %v1236
        %v1238 = vperm.slane %v1230, %v1237
        %v1239 = vrot.slane %v1217, 4
        %v1240 = vsel %vm576, %v1239, %v1213
        %v1241 = vrot.slane %v1213, 4
        %v1242 = vsel %vm576, %v1217, %v1241
        %v1244 = vunpack.c.l.s4 1983009808
        %v1245 = vunpack.c.0.s8 %v1244
        %v1246 = vperm.slane %v1240, %v1245
        %v1248 = vunpack.c.l.s4 1983009808
        %v1249 = vunpack.c.0.s8 %v1248
        %v1250 = vperm.slane %v1242, %v1249
        %v1251 = vrot.slane %v1223, 4
        %v1252 = vsel %vm576, %v1251, %v1219
        %v1253 = vrot.slane %v1219, 4
        %v1254 = vsel %vm576, %v1223, %v1253
        %v1256 = vunpack.c.l.s4 1983009808
        %v1257 = vunpack.c.0.s8 %v1256
        %v1258 = vperm.slane %v1252, %v1257
        %v1260 = vunpack.c.l.s4 1983009808
        %v1261 = vunpack.c.0.s8 %v1260
        %v1262 = vperm.slane %v1254, %v1261
        %v1263 = vrot.slane %v1225, 4
        %v1264 = vsel %vm576, %v1263, %v1221
        %v1265 = vrot.slane %v1221, 4
        %v1266 = vsel %vm576, %v1225, %v1265
        %v1268 = vunpack.c.l.s4 1983009808
        %v1269 = vunpack.c.0.s8 %v1268
        %v1270 = vperm.slane %v1264, %v1269
        %v1272 = vunpack.c.l.s4 1983009808
        %v1273 = vunpack.c.0.s8 %v1272
        %v1274 = vperm.slane %v1266, %v1273
        %v1275 = vrot.slane %v1246, 4
        %v1276 = vsel %vm576, %v1275, %v1234
        %v1277 = vrot.slane %v1234, 4
        %v1278 = vsel %vm576, %v1246, %v1277
        %v1280 = vunpack.c.l.s4 1934713408
        %v1281 = vunpack.c.0.s8 %v1280
        %v1282 = vperm.slane %v1276, %v1281
        %v1284 = vunpack.c.l.s4 1934713408
        %v1285 = vunpack.c.0.s8 %v1284
        %v1286 = vperm.slane %v1278, %v1285
        %v1287 = vrot.slane %v1250, 4
        %v1288 = vsel %vm576, %v1287, %v1238
        %v1289 = vrot.slane %v1238, 4
        %v1290 = vsel %vm576, %v1250, %v1289
        %v1292 = vunpack.c.l.s4 1934713408
        %v1293 = vunpack.c.0.s8 %v1292
        %v1294 = vperm.slane %v1288, %v1293
        %v1296 = vunpack.c.l.s4 1934713408
        %v1297 = vunpack.c.0.s8 %v1296
        %v1298 = vperm.slane %v1290, %v1297
        %v1299 = vrot.slane %v1270, 4
        %v1300 = vsel %vm576, %v1299, %v1258
        %v1301 = vrot.slane %v1258, 4
        %v1302 = vsel %vm576, %v1270, %v1301
        %v1304 = vunpack.c.l.s4 1934713408
        %v1305 = vunpack.c.0.s8 %v1304
        %v1306 = vperm.slane %v1300, %v1305
        %v1308 = vunpack.c.l.s4 1934713408
        %v1309 = vunpack.c.0.s8 %v1308
        %v1310 = vperm.slane %v1302, %v1309
        %v1311 = vrot.slane %v1274, 4
        %v1312 = vsel %vm576, %v1311, %v1262
        %v1313 = vrot.slane %v1262, 4
        %v1314 = vsel %vm576, %v1274, %v1313
        %v1316 = vunpack.c.l.s4 1934713408
        %v1317 = vunpack.c.0.s8 %v1316
        %v1318 = vperm.slane %v1312, %v1317
        %v1320 = vunpack.c.l.s4 1934713408
        %v1321 = vunpack.c.0.s8 %v1320
        %v1322 = vperm.slane %v1314, %v1321
        %v1323 = vrot.slane %v1306, 4
        %v1324 = vsel %vm576, %v1323, %v1282
        %v1325 = vrot.slane %v1282, 4
        %v1326 = vsel %vm576, %v1306, %v1325
        %v1327 = vrot.slane %v1310, 4
        %v1328 = vsel %vm576, %v1327, %v1286
        %v1329 = vrot.slane %v1286, 4
        %v1330 = vsel %vm576, %v1310, %v1329
        %v1331 = vrot.slane %v1318, 4
        %v1332 = vsel %vm576, %v1331, %v1294
        %v1333 = vrot.slane %v1294, 4
        %v1334 = vsel %vm576, %v1318, %v1333
        %v1335 = vrot.slane %v1322, 4
        %v1336 = vsel %vm576, %v1335, %v1298
        %v1337 = vrot.slane %v1298, 4
        %v1338 = vsel %vm576, %v1322, %v1337
        %v1339 = vrot.slane %v1216, 4
        %v1340 = vsel %vm576, %v1339, %v1212
        %v1341 = vrot.slane %v1212, 4
        %v1342 = vsel %vm576, %v1216, %v1341
        %v1344 = vunpack.c.l.s4 1983009808
        %v1345 = vunpack.c.0.s8 %v1344
        %v1346 = vperm.slane %v1340, %v1345
        %v1348 = vunpack.c.l.s4 1983009808
        %v1349 = vunpack.c.0.s8 %v1348
        %v1350 = vperm.slane %v1342, %v1349
        %v1351 = vrot.slane %v1218, 4
        %v1352 = vsel %vm576, %v1351, %v1214
        %v1353 = vrot.slane %v1214, 4
        %v1354 = vsel %vm576, %v1218, %v1353
        %v1356 = vunpack.c.l.s4 1983009808
        %v1357 = vunpack.c.0.s8 %v1356
        %v1358 = vperm.slane %v1352, %v1357
        %v1360 = vunpack.c.l.s4 1983009808
        %v1361 = vunpack.c.0.s8 %v1360
        %v1362 = vperm.slane %v1354, %v1361
        %v1363 = vrot.slane %v1224, 4
        %v1364 = vsel %vm576, %v1363, %v1220
        %v1365 = vrot.slane %v1220, 4
        %v1366 = vsel %vm576, %v1224, %v1365
        %v1368 = vunpack.c.l.s4 1983009808
        %v1369 = vunpack.c.0.s8 %v1368
        %v1370 = vperm.slane %v1364, %v1369
        %v1372 = vunpack.c.l.s4 1983009808
        %v1373 = vunpack.c.0.s8 %v1372
        %v1374 = vperm.slane %v1366, %v1373
        %v1375 = vrot.slane %v1226, 4
        %v1376 = vsel %vm576, %v1375, %v1222
        %v1377 = vrot.slane %v1222, 4
        %v1378 = vsel %vm576, %v1226, %v1377
        %v1380 = vunpack.c.l.s4 1983009808
        %v1381 = vunpack.c.0.s8 %v1380
        %v1382 = vperm.slane %v1376, %v1381
        %v1384 = vunpack.c.l.s4 1983009808
        %v1385 = vunpack.c.0.s8 %v1384
        %v1386 = vperm.slane %v1378, %v1385
        %v1387 = vrot.slane %v1358, 4
        %v1388 = vsel %vm576, %v1387, %v1346
        %v1389 = vrot.slane %v1346, 4
        %v1390 = vsel %vm576, %v1358, %v1389
        %v1392 = vunpack.c.l.s4 1934713408
        %v1393 = vunpack.c.0.s8 %v1392
        %v1394 = vperm.slane %v1388, %v1393
        %v1396 = vunpack.c.l.s4 1934713408
        %v1397 = vunpack.c.0.s8 %v1396
        %v1398 = vperm.slane %v1390, %v1397
        %v1399 = vrot.slane %v1362, 4
        %v1400 = vsel %vm576, %v1399, %v1350
        %v1401 = vrot.slane %v1350, 4
        %v1402 = vsel %vm576, %v1362, %v1401
        %v1404 = vunpack.c.l.s4 1934713408
        %v1405 = vunpack.c.0.s8 %v1404
        %v1406 = vperm.slane %v1400, %v1405
        %v1408 = vunpack.c.l.s4 1934713408
        %v1409 = vunpack.c.0.s8 %v1408
        %v1410 = vperm.slane %v1402, %v1409
        %v1411 = vrot.slane %v1382, 4
        %v1412 = vsel %vm576, %v1411, %v1370
        %v1413 = vrot.slane %v1370, 4
        %v1414 = vsel %vm576, %v1382, %v1413
        %v1416 = vunpack.c.l.s4 1934713408
        %v1417 = vunpack.c.0.s8 %v1416
        %v1418 = vperm.slane %v1412, %v1417
        %v1420 = vunpack.c.l.s4 1934713408
        %v1421 = vunpack.c.0.s8 %v1420
        %v1422 = vperm.slane %v1414, %v1421
        %v1423 = vrot.slane %v1386, 4
        %v1424 = vsel %vm576, %v1423, %v1374
        %v1425 = vrot.slane %v1374, 4
        %v1426 = vsel %vm576, %v1386, %v1425
        %v1428 = vunpack.c.l.s4 1934713408
        %v1429 = vunpack.c.0.s8 %v1428
        %v1430 = vperm.slane %v1424, %v1429
        %v1432 = vunpack.c.l.s4 1934713408
        %v1433 = vunpack.c.0.s8 %v1432
        %v1434 = vperm.slane %v1426, %v1433
        %v1435 = vrot.slane %v1418, 4
        %v1436 = vsel %vm576, %v1435, %v1394
        %v1437 = vrot.slane %v1394, 4
        %v1438 = vsel %vm576, %v1418, %v1437
        %v1439 = vrot.slane %v1422, 4
        %v1440 = vsel %vm576, %v1439, %v1398
        %v1441 = vrot.slane %v1398, 4
        %v1442 = vsel %vm576, %v1422, %v1441
        %v1443 = vrot.slane %v1430, 4
        %v1444 = vsel %vm576, %v1443, %v1406
        %v1445 = vrot.slane %v1406, 4
        %v1446 = vsel %vm576, %v1430, %v1445
        %v1447 = vrot.slane %v1434, 4
        %v1448 = vsel %vm576, %v1447, %v1410
        %v1449 = vrot.slane %v1410, 4
        %v1450 = vsel %vm576, %v1434, %v1449
        %1452 = vrot.lane.b32.xlu0 %v1326, 16
        %v1453 = vpop.permute.xlu0 %1452
        %1456 = vrot.lane.b32.xlu0 %v1328, 32
        %v1457 = vpop.permute.xlu0 %1456
        %1460 = vrot.lane.b32.xlu0 %v1330, 48
        %v1461 = vpop.permute.xlu0 %1460
        %1464 = vrot.lane.b32.xlu0 %v1332, 64
        %v1465 = vpop.permute.xlu0 %1464
        %1468 = vrot.lane.b32.xlu0 %v1334, 80
        %v1469 = vpop.permute.xlu0 %1468
        %1472 = vrot.lane.b32.xlu0 %v1336, 96
        %v1473 = vpop.permute.xlu0 %1472
        %1476 = vrot.lane.b32.xlu0 %v1338, 112
        %v1477 = vpop.permute.xlu0 %1476
        %1480 = vrot.lane.b32.xlu0 %v1438, 16
        %v1481 = vpop.permute.xlu0 %1480
        %1484 = vrot.lane.b32.xlu0 %v1440, 32
        %v1485 = vpop.permute.xlu0 %1484
        %1488 = vrot.lane.b32.xlu0 %v1442, 48
        %v1489 = vpop.permute.xlu0 %1488
        %1492 = vrot.lane.b32.xlu0 %v1444, 64
        %v1493 = vpop.permute.xlu0 %1492
        %1496 = vrot.lane.b32.xlu0 %v1446, 80
        %v1497 = vpop.permute.xlu0 %1496
        %1500 = vrot.lane.b32.xlu0 %v1448, 96
        %v1501 = vpop.permute.xlu0 %1500
        %1504 = vrot.lane.b32.xlu0 %v1450, 112
        %v1505 = vpop.permute.xlu0 %1504
        %v1507 = vsel %vm743, %v1324, %v1453
        %vm1508 = vcmask 261120
        %v1509 = vsel %vm1508, %v1507, %v1457
        %vm1510 = vcmask 392192
        %v1511 = vsel %vm1510, %v1509, %v1461
        %vm1512 = vcmask 523264
        %v1513 = vsel %vm1512, %v1511, %v1465
        %vm1514 = vcmask 654336
        %v1515 = vsel %vm1514, %v1513, %v1469
        %vm1516 = vcmask 785408
        %v1517 = vsel %vm1516, %v1515, %v1473
        %vm1518 = vcmask 916480
        %v1519 = vsel %vm1518, %v1517, %v1477
        %v1520 = vsel %vm743, %v1436, %v1481
        %v1521 = vsel %vm1508, %v1520, %v1485
        %v1522 = vsel %vm1510, %v1521, %v1489
        %v1523 = vsel %vm1512, %v1522, %v1493
        %v1524 = vsel %vm1514, %v1523, %v1497
        %v1525 = vsel %vm1516, %v1524, %v1501
        %v1526 = vsel %vm1518, %v1525, %v1505
        %v1527 = vmul.f32 %v522, %v1519
        %v1528 = vmul.f32 %v537, %v1526
        %v1529 = vld [vmem:[%s11] sm:$0xff]
        %v1530 = vld [vmem:[%s12] sm:$0xff]
        %1532 = vset.pattern.permute.xlu0 0
        %1533 = vperm.xlu0 %1532, %v1530
        %v1534 = vpop.permute.xlu0 %1533
        %vm1536 = vcmask 64512
        %v1538 = vsel %vm1536, %v1529, 0
        %1540 = vmatpush.msra.mxu0 0.0
        %1541 = vmatpush.msra.mxu0 0.0
        %1542 = vmatpush.msra.mxu0 0.0
        %1543 = vmatpush.msra.mxu0 0.0
        %1544 = vmatpush.msra.mxu0 0.0
        %1545 = vmatpush.msra.mxu0 0.0
        %1546 = vmatpush.msra.mxu0 0.0
        %1547 = vmatpush.msra.mxu0 0.0
        %1548 = vmatpush.msra.mxu0 0.0
        %1549 = vmatpush.msra.mxu0 0.0
        %1550 = vmatpush.msra.mxu0 0.0
        %1551 = vmatpush.msra.mxu0 0.0
        %1552 = vmatpush.msra.mxu0 0.0
        %1553 = vmatpush.msra.mxu0 0.0
        %1554 = vmatpush.msra.mxu0 0.0
        %1555 = vmatpush.msra.mxu0 %v1527
        %1556 = vmatmul.f32.gmra.mxu0 %v1538
        %v1557 = vpop.f32.mrf.mxu0
        %v1558 = vadd.f32 %v1534, %v1557
        %1559 = vdwg.mxu0
        %1560 = vmatpush.msra.mxu0 0.0
        %1561 = vmatpush.msra.mxu0 0.0
        %1562 = vmatpush.msra.mxu0 0.0
        %1563 = vmatpush.msra.mxu0 0.0
        %1564 = vmatpush.msra.mxu0 0.0
        %1565 = vmatpush.msra.mxu0 0.0
        %1566 = vmatpush.msra.mxu0 0.0
        %1567 = vmatpush.msra.mxu0 0.0
        %1568 = vmatpush.msra.mxu0 0.0
        %1569 = vmatpush.msra.mxu0 0.0
        %1570 = vmatpush.msra.mxu0 0.0
        %1571 = vmatpush.msra.mxu0 0.0
        %1572 = vmatpush.msra.mxu0 0.0
        %1573 = vmatpush.msra.mxu0 0.0
        %1574 = vmatpush.msra.mxu0 0.0
        %1575 = vmatpush.msra.mxu0 %v1528
        %1576 = vmatmul.f32.gmra.mxu0 %v1538
        %v1577 = vpop.f32.mrf.mxu0
        %v1578 = vadd.f32 %v1534, %v1577
        %1579 = vdwg.mxu0
        %v1580 = vxor.u32 %v1558, 2147483648
        %v1581 = vxor.u32 %v1578, 2147483648
        %v1582 = vmul.f32 %v1580, 1.442695
        %v1583 = vpow.pop %v1582
        %v1584 = vmul.f32 %v1581, 1.442695
        %v1585 = vpow.pop %v1584
        %v1586 = vadd.f32 %v1583, 1.0
        %v1587 = vadd.f32 %v1585, 1.0
        %v1588 = vrcp.pop %v1586
        %v1589 = vmul.f32 %v1586, %v1588
        %v1590 = vsub.f32 1.0, %v1589
        %v1591 = vmul.f32 %v1588, %v1590
        %v1592 = vadd.f32 %v1588, %v1591
        %vm1593 = vweird.f32 %v1586
        %vm1594 = vweird.f32 %v1588
        %vm1595 = vmor %vm1593, %vm1594
        %v1596 = vsel %vm1595, %v1588, %v1592
        %v1597 = vand.u32 2147483647, %v1586
        %vm1598 = vcmp.eq.f32.partialorder %v1597, 8.507059e+37
        %v1599 = vand.u32 %v1586, 2147483648
        %v1600 = vor.u32 1.1754944e-38, %v1599
        %v1601 = vsel %vm1598, %v1600, %v1596
        %v1602 = vmul.f32 1.0, %v1601
        %v1603 = vrcp.pop %v1587
        %v1604 = vmul.f32 %v1587, %v1603
        %v1605 = vsub.f32 1.0, %v1604
        %v1606 = vmul.f32 %v1603, %v1605
        %v1607 = vadd.f32 %v1603, %v1606
        %vm1608 = vweird.f32 %v1587
        %vm1609 = vweird.f32 %v1603
        %vm1610 = vmor %vm1608, %vm1609
        %v1611 = vsel %vm1610, %v1603, %v1607
        %v1612 = vand.u32 2147483647, %v1587
        %vm1613 = vcmp.eq.f32.partialorder %v1612, 8.507059e+37
        %v1614 = vand.u32 %v1587, 2147483648
        %v1615 = vor.u32 1.1754944e-38, %v1614
        %v1616 = vsel %vm1613, %v1615, %v1611
        %v1617 = vmul.f32 1.0, %v1616
        %1618 = vst [vmem:[%s433] sm:$0xff] %v1602
        %1619 = vst [vmem:[%s433 + $0x8] sm:$0xff] %v1617
        %s1620 = sand.u32 %s313, 1
        %s1621 = scalar_lea.sflag [#allocation3], %s1620
        %s1622 = sand.u32 %s313, 1
        %s1623 = smul.addr %s1622, 16
        %s1624 = scalar_lea.vmem [#allocation2], %s1623
        // Predicated region
        $region73: #{tpu_custom_call.1} parent=71 // pred_check
          %p1625 = pneg %p323
        $region74: #{tpu_custom_call.1} parent=71 // pred_check_branch
          %1627 = sbr.rel (%p1625) target = $region76
        $region75: #{tpu_custom_call.1} parent=71 // pred_region
          %1629 = vsyncadd %s1621, 0
          %s1630 = smul.addr %s27, 2
          %s1631 = smul.addr %s1630, 8
          %s1632 = scalar_lea.hbm %s13, %s1631
          %s1634 = sshll.u32 %s1624, 4
          %s1635 = int_to_ptr.vmem [resolvable:$true] %s1634
          %s1636 = sshll.u32 %s1632, 4
          %s1637 = int_to_ptr.hbm [resolvable:$true] %s1636
          %1639 = dma.vmem_to_hbm [thread:$0]  %s1635, 256, %s1637, %s1621
        $region76: #{tpu_custom_call.1} parent=71 // pred_fallthru
          _
      $region72: #{tpu_custom_call.1} parent=5 // pred_fallthru
        _
      %p1640 = scmp.le.s32.totalorder 2, %s22
      // Predicated region
      $region77: #{tpu_custom_call.1} parent=5 // pred_check
        %p1641 = pneg %p1640
      $region78: #{tpu_custom_call.1} parent=5 // pred_check_branch
        %1643 = sbr.rel (%p1641) target = $region80
      $region79: #{tpu_custom_call.1} parent=5 // pred_region
        %s1644 = ssub.s32 %s22, 2
        // Predicated region
        $region81: #{tpu_custom_call.1} parent=79 // pred_check
          %p1645 = pneg %p329
        $region82: #{tpu_custom_call.1} parent=79 // pred_check_branch
          %1647 = sbr.rel (%p1645) target = $region84
        $region83: #{tpu_custom_call.1} parent=79 // pred_region
          %s1648 = sand.u32 %s314, 1
          %s1649 = scalar_lea.sflag [#allocation3], %s1648
          %s1650 = sand.u32 %s314, 1
          %s1651 = smul.addr %s1650, 16
          %s1652 = scalar_lea.vmem [#allocation2], %s1651
          %1654 = dma.done %s1649, 256
        $region84: #{tpu_custom_call.1} parent=79 // pred_fallthru
          _
      $region80: #{tpu_custom_call.1} parent=5 // pred_fallthru
        _
    $region6: #{tpu_custom_call.1} parent=1 // loop_footer
      %s26 = sadd.s32 1, %s22
    $region7: #{tpu_custom_call.1} parent=1 // loop_footer_branch
      %21 = sbr.rel target = $region3
    $region8: #{tpu_custom_call.1} parent=1 // loop_exit
      _
    %1655 = vsyncpa [#allocation3], 1
    %s1656 = scalar_lea.sflag [#allocation3], 1
    %1657 = vsyncpa %s1656, 1

</llo_original>
